<compile_context>
chip_gen: v5e
topology: v5e:2x2
jax: 0.10.0
libtpu: 0.0.40
codegen_flags: <defaults>
</compile_context>

<pallas_src>
import functools

import jax
import jax.numpy as jnp
from jax.experimental import pallas as pl
from jax.experimental.pallas import tpu as pltpu


# ---------------------------------------------------------------------------
# Kernel 1/2: fused [per-channel affine (BN apply) + ReLU] -> depthwise KxK
# (VPU, rolled taps) -> pointwise 1x1 (MXU, bf16 operands, f32 accumulate),
# plus per-image BN partial statistics (sum / sum-of-squares per channel).
# Layout inside the kernel: (C, H*W) with H*W on the lane axis.
# ---------------------------------------------------------------------------
def _conv_block_kernel(x_ref, scale_ref, shift_ref, dw_ref, pw_ref,
                       y_ref, stats_ref, *, H, W, K):
    HW = H * W
    P = (K - 1) // 2

    x = x_ref[0].astype(jnp.float32)                            # (C, HW)

    # Fused per-channel affine (BN apply) + ReLU, hoisted out of the tap loop.
    z = jnp.maximum(x * scale_ref[...] + shift_ref[...], 0.0)   # (C, HW)

    # Hoisted row / column validity masks (built once, reused per tap).
    pos = jax.lax.broadcasted_iota(jnp.int32, (1, HW), 1)
    col = pos % W
    row_mask = {}
    col_mask = {}
    for o in range(-P, P + 1):
        if o == 0:
            continue
        row_mask[o] = ((pos >= max(-o, 0) * W) &
                       (pos < HW - max(o, 0) * W)).astype(jnp.float32)
        col_mask[o] = ((col >= max(-o, 0)) &
                       (col < W - max(o, 0))).astype(jnp.float32)

    # Depthwise KxK on the VPU: lane-rolled taps + per-channel broadcast FMA.
    # Each tap is consumed immediately -> small live set, no patch buffer.
    acc = jnp.zeros_like(z)                                     # (C, HW) f32
    t = 0
    for dy in range(K):
        for dx in range(K):
            oy, ox = dy - P, dx - P
            d = oy * W + ox
            v = z if d == 0 else pltpu.roll(z, (-d) % HW, axis=1)
            m = None
            if oy != 0:
                m = row_mask[oy]
            if ox != 0:
                m = col_mask[ox] if m is None else m * col_mask[ox]
            if m is not None:
                v = v * m                                       # zero-pad taps
            acc = acc + dw_ref[t] * v                           # (C,1)*(C,HW)
            t += 1

    # Pointwise 1x1 conv: single MXU matmul, bf16 operands, f32 accumulation.
    y = jnp.dot(pw_ref[...], acc.astype(jnp.bfloat16),
                preferred_element_type=jnp.float32)             # (C_out, HW)

    # Per-image BN partial statistics from the f32 values (before bf16 store),
    # packed into one lane-width-2 output (single small per-step DMA).
    s = jnp.sum(y, axis=1, keepdims=True)                       # (C_out, 1)
    ss = jnp.sum(y * y, axis=1, keepdims=True)                  # (C_out, 1)
    stats_ref[0] = jnp.concatenate([s, ss], axis=1)             # (C_out, 2)

    y_ref[0] = y.astype(y_ref.dtype)                            # lane-dense bf16


def _conv_block(x, scale, shift, dw, pw, H, W, K):
    """x: (N, C, H*W); scale/shift: (C,1) f32; dw: (K*K, C, 1) f32;
    pw: (C_out, C) bf16.  Returns y (N, C_out, H*W) bf16, stats (N, C_out, 2)."""
    N, C, HW = x.shape
    c_out = pw.shape[0]
    kernel = functools.partial(_conv_block_kernel, H=H, W=W, K=K)

    # VMEM budget: double-buffered in/out tiles + in-kernel temporaries
    # (z, rolled tap, acc, y in f32, masks) + weights + headroom.
    tile_in = C * HW * x.dtype.itemsize
    tile_out = c_out * HW * 2 + c_out * 2 * 4
    tmps = 6 * max(C, c_out) * HW * 4
    weights = K * K * C * 4 + c_out * C * 2
    vmem_bytes = int(2 * (tile_in + tile_out) + tmps + weights + (8 << 20))

    return pl.pallas_call(
        kernel,
        grid=(N,),
        in_specs=[
            pl.BlockSpec((1, C, HW), lambda n: (n, 0, 0)),
            pl.BlockSpec((C, 1), lambda n: (0, 0)),
            pl.BlockSpec((C, 1), lambda n: (0, 0)),
            pl.BlockSpec((K * K, C, 1), lambda n: (0, 0, 0)),
            pl.BlockSpec((c_out, C), lambda n: (0, 0)),
        ],
        out_specs=[
            pl.BlockSpec((1, c_out, HW), lambda n: (n, 0, 0)),
            pl.BlockSpec((1, c_out, 2), lambda n: (n, 0, 0)),
        ],
        out_shape=[
            jax.ShapeDtypeStruct((N, c_out, HW), jnp.bfloat16),
            jax.ShapeDtypeStruct((N, c_out, 2), jnp.float32),
        ],
        compiler_params=pltpu.CompilerParams(
            dimension_semantics=("parallel",),   # no cross-step state -> megacore OK
            vmem_limit_bytes=min(vmem_bytes, 64 * 1024 * 1024)),
    )(x, scale, shift, dw, pw)


# ---------------------------------------------------------------------------
# Kernel 3: final BatchNorm apply (elementwise, lane-dense (C, H*W) tiles).
# Reads the bf16 inter-stage activation, emits the module's f32 output.
# ---------------------------------------------------------------------------
def _bn_apply_kernel(y_ref, scale_ref, shift_ref, o_ref):
    o_ref[0] = (y_ref[0].astype(jnp.float32) * scale_ref[...]
                + shift_ref[...]).astype(o_ref.dtype)


def _bn_apply(y, scale, shift):
    N, C, HW = y.shape
    tile = C * HW * (2 + 4)
    vmem_bytes = int(2 * tile + (8 << 20))
    return pl.pallas_call(
        _bn_apply_kernel,
        grid=(N,),
        in_specs=[
            pl.BlockSpec((1, C, HW), lambda n: (n, 0, 0)),
            pl.BlockSpec((C, 1), lambda n: (0, 0)),
            pl.BlockSpec((C, 1), lambda n: (0, 0)),
        ],
        out_specs=pl.BlockSpec((1, C, HW), lambda n: (n, 0, 0)),
        out_shape=jax.ShapeDtypeStruct((N, C, HW), jnp.float32),
        compiler_params=pltpu.CompilerParams(
            dimension_semantics=("parallel",),
            vmem_limit_bytes=min(vmem_bytes, 64 * 1024 * 1024)),
    )(y, scale, shift)


def _bn_scale_shift(stats, count, gamma, beta, eps):
    """Reduce per-image partials and fold BN into per-channel scale/shift."""
    s = jnp.sum(stats[:, :, 0:1], axis=0)        # (C, 1)
    ss = jnp.sum(stats[:, :, 1:2], axis=0)       # (C, 1)
    mean = s / count
    var = jnp.maximum(ss / count - mean * mean, 0.0)   # guard tiny negatives
    scale = gamma[:, None] * jax.lax.rsqrt(var + eps)
    shift = beta[:, None] - mean * scale
    return scale, shift


# ---------------------------------------------------------------------------
# Full forward pass (NCHW in / NCHW out; no transposes, only free reshapes).
# ---------------------------------------------------------------------------
@functools.partial(jax.jit, static_argnames=("kernel_size",))
def sharp_sep_conv(x_nchw, params, kernel_size=3, eps=1e-5):
    p = params
    K = kernel_size
    N, C_in, H, W = x_nchw.shape
    HW = H * W
    cnt = N * HW
    x = x_nchw.reshape(N, C_in, HW).astype(jnp.float32)

    # Stage 1: ReLU -> dw1 (VPU) -> pw1 (MXU) + BN1 partial stats.
    ident_s = jnp.ones((C_in, 1), jnp.float32)
    ident_b = jnp.zeros((C_in, 1), jnp.float32)
    y1, st1 = _conv_block(x, ident_s, ident_b, p["dw1"], p["pw1"], H, W, K)
    scale1, shift1 = _bn_scale_shift(st1, cnt, p["gamma1"], p["beta1"], eps)

    # Stage 2: fused BN1-apply + ReLU -> dw2 -> pw2 + BN2 partial stats.
    y2, st2 = _conv_block(y1, scale1, shift1, p["dw2"], p["pw2"], H, W, K)
    scale2, shift2 = _bn_scale_shift(st2, cnt, p["gamma2"], p["beta2"], eps)

    # Stage 3: final BN apply (elementwise kernel).
    out = _bn_apply(y2, scale2, shift2)
    return out.reshape(N, -1, H, W)                       # already NCHW


# ---------------------------------------------------------------------------
# Weight preparation: keep depthwise and pointwise SEPARATE.
#   depthwise torch (C,1,K,K)  -> (K*K, C, 1) f32   (tap-major, per-channel col)
#   pointwise torch (Co,C,1,1) -> (Co, C)    bf16   (MXU operand)
# ---------------------------------------------------------------------------
def _prep_dw(dw_t):
    C, _, K, _ = dw_t.shape
    dw = jnp.transpose(dw_t[:, 0], (1, 2, 0)).reshape(K * K, C)   # (K*K, C)
    return dw[:, :, None].astype(jnp.float32)                     # (K*K, C, 1)


def _prep_pw(pw_t):
    return pw_t[:, :, 0, 0].astype(jnp.bfloat16)                  # (Co, C)


# ---------------------------------------------------------------------------
# Pure-JAX reference (mirrors the PyTorch module semantics, f32 throughout).
# ---------------------------------------------------------------------------
def _reference(x, p, eps=1e-5):
    def dwconv(h, w):  # w: (C, 1, K, K), groups=C
        return jax.lax.conv_general_dilated(
            h, w, (1, 1), ((1, 1), (1, 1)),
            feature_group_count=w.shape[0],
            dimension_numbers=("NCHW", "OIHW", "NCHW"))

    def pwconv(h, w):  # w: (Co, Ci, 1, 1)
        return jax.lax.conv_general_dilated(
            h, w, (1, 1), ((0, 0), (0, 0)),
            dimension_numbers=("NCHW", "OIHW", "NCHW"))

    def bn(h, g, b):
        mean = jnp.mean(h, axis=(0, 2, 3), keepdims=True)
        var = jnp.var(h, axis=(0, 2, 3), keepdims=True)
        return (h - mean) * jax.lax.rsqrt(var + eps) * g[None, :, None, None] \
            + b[None, :, None, None]

    h = jnp.maximum(x, 0.0)
    h = dwconv(h, p["dw1_t"]); h = pwconv(h, p["pw1_t"])
    h = bn(h, p["gamma1"], p["beta1"])
    h = jnp.maximum(h, 0.0)
    h = dwconv(h, p["dw2_t"]); h = pwconv(h, p["pw2_t"])
    h = bn(h, p["gamma2"], p["beta2"])
    return h


def make_params(key, c_in, c_out, c_mid):
    ks = jax.random.split(key, 8)
    dw1_t = 0.3 * jax.random.normal(ks[0], (c_in, 1, 3, 3), jnp.float32)
    pw1_t = 0.3 * jax.random.normal(ks[1], (c_mid, c_in, 1, 1), jnp.float32)
    dw2_t = 0.3 * jax.random.normal(ks[2], (c_mid, 1, 3, 3), jnp.float32)
    pw2_t = 0.3 * jax.random.normal(ks[3], (c_out, c_mid, 1, 1), jnp.float32)
    gamma1 = 1.0 + 0.1 * jax.random.normal(ks[4], (c_mid,), jnp.float32)
    beta1 = 0.1 * jax.random.normal(ks[5], (c_mid,), jnp.float32)
    gamma2 = 1.0 + 0.1 * jax.random.normal(ks[6], (c_out,), jnp.float32)
    beta2 = 0.1 * jax.random.normal(ks[7], (c_out,), jnp.float32)
    return {
        # Torch-layout copies (reference path)
        "dw1_t": dw1_t, "pw1_t": pw1_t, "dw2_t": dw2_t, "pw2_t": pw2_t,
        # Kernel-layout weights (depthwise / pointwise kept separate)
        "dw1": _prep_dw(dw1_t), "pw1": _prep_pw(pw1_t),
        "dw2": _prep_dw(dw2_t), "pw2": _prep_pw(pw2_t),
        "gamma1": gamma1, "beta1": beta1, "gamma2": gamma2, "beta2": beta2,
    }


if __name__ == "__main__":
    key = jax.random.PRNGKey(0)
    k_x, k_p = jax.random.split(key)

    N, C_in, H, W = 2, 4, 16, 16
    C_out = 8
    C_mid = C_out * 1  # C_mid_mult = 1

    x = jax.random.normal(k_x, (N, C_in, H, W), jnp.float32)
    params = make_params(k_p, C_in, C_out, C_mid)

    out = sharp_sep_conv(x, params)
    out = jax.block_until_ready(out)
    assert out.shape == (N, C_out, H, W), out.shape

    ref = _reference(x, params)
    err = jnp.abs(out - ref)
    max_err = float(jnp.max(err))
    mean_err = float(jnp.mean(err))
    # bf16 MXU operands + bf16 inter-stage activations -> looser tolerance
    # than a pure-f32 pipeline (reference is f32 end-to-end).
    assert max_err < 1e-1 and mean_err < 2e-2, (max_err, mean_err)

    print("KERNEL_OK")
</pallas_src>

<mosaic_0001>
module attributes {stable_mosaic.version = 11 : i64} {
  func.func @_conv_block_kernel(%arg0: i32, %arg1: memref<1x4x256xf32, #tpu.memory_space<vmem>>, %arg2: memref<4x1xf32, #tpu.memory_space<vmem>>, %arg3: memref<4x1xf32, #tpu.memory_space<vmem>>, %arg4: memref<9x4x1xf32, #tpu.memory_space<vmem>>, %arg5: memref<8x4xbf16, #tpu.memory_space<vmem>>, %arg6: memref<1x8x256xbf16, #tpu.memory_space<vmem>>, %arg7: memref<1x8x2xf32, #tpu.memory_space<vmem>>) attributes {dimension_semantics = [#tpu.dimension_semantics<parallel>], iteration_bounds = array<i64: 2>, scalar_prefetch = 0 : i64, scratch_operands = 0 : i64, tpu.core_type = #tpu.core_type<tc>, window_params = [{transform_indices = @transform_0, window_bounds = array<i64: 1, 4, 256>}, {pipeline_mode = #tpu.pipeline_mode<synchronous>, transform_indices = @transform_1, window_bounds = array<i64: 4, 1>}, {pipeline_mode = #tpu.pipeline_mode<synchronous>, transform_indices = @transform_2, window_bounds = array<i64: 4, 1>}, {pipeline_mode = #tpu.pipeline_mode<synchronous>, transform_indices = @transform_3, window_bounds = array<i64: 9, 4, 1>}, {pipeline_mode = #tpu.pipeline_mode<synchronous>, transform_indices = @transform_4, window_bounds = array<i64: 8, 4>}, {transform_indices = @transform_5, window_bounds = array<i64: 1, 8, 256>}, {transform_indices = @transform_6, window_bounds = array<i64: 1, 8, 2>}]} {
    %c0 = arith.constant 0 : index
    %c0_0 = arith.constant 0 : index
    %c0_1 = arith.constant 0 : index
    %0 = vector.load %arg1[%c0, %c0_0, %c0_1] : memref<1x4x256xf32, #tpu.memory_space<vmem>>, vector<1x4x256xf32>
    %1 = vector.shape_cast %0 : vector<1x4x256xf32> to vector<4x256xf32>
    %c0_2 = arith.constant 0 : index
    %c0_3 = arith.constant 0 : index
    %2 = vector.load %arg2[%c0_2, %c0_3] : memref<4x1xf32, #tpu.memory_space<vmem>>, vector<4x1xf32>
    %3 = vector.broadcast %2 : vector<4x1xf32> to vector<4x256xf32>
    %4 = arith.mulf %1, %3 : vector<4x256xf32>
    %c0_4 = arith.constant 0 : index
    %c0_5 = arith.constant 0 : index
    %5 = vector.load %arg3[%c0_4, %c0_5] : memref<4x1xf32, #tpu.memory_space<vmem>>, vector<4x1xf32>
    %6 = vector.broadcast %5 : vector<4x1xf32> to vector<4x256xf32>
    %7 = arith.addf %4, %6 : vector<4x256xf32>
    %cst = arith.constant 0.000000e+00 : f32
    %8 = vector.broadcast %cst : f32 to vector<4x256xf32>
    %9 = arith.maximumf %7, %8 : vector<4x256xf32>
    %10 = tpu.iota {dimensions = array<i32: 1>} : vector<1x256xi32>
    %c16_i32 = arith.constant 16 : i32
    %c0_i32 = arith.constant 0 : i32
    %11 = arith.cmpi eq, %c16_i32, %c0_i32 : i32
    %c1_i32 = arith.constant 1 : i32
    %12 = arith.select %11, %c1_i32, %c16_i32 : i32
    %13 = vector.broadcast %12 : i32 to vector<1x256xi32>
    %14 = arith.remsi %10, %13 : vector<1x256xi32>
    %c0_i32_6 = arith.constant 0 : i32
    %15 = vector.broadcast %c0_i32_6 : i32 to vector<1x256xi32>
    %16 = arith.cmpi ne, %14, %15 : vector<1x256xi32>
    %c0_i32_7 = arith.constant 0 : i32
    %17 = vector.broadcast %c0_i32_7 : i32 to vector<1x256xi32>
    %18 = arith.cmpi slt, %14, %17 : vector<1x256xi32>
    %c0_i32_8 = arith.constant 0 : i32
    %19 = arith.cmpi slt, %12, %c0_i32_8 : i32
    %20 = vector.broadcast %19 : i1 to vector<1x256xi1>
    %21 = vector.broadcast %20 : vector<1x256xi1> to vector<1x256xi1>
    %22 = arith.xori %18, %21 : vector<1x256xi1>
    %23 = arith.andi %22, %16 : vector<1x256xi1>
    %24 = vector.broadcast %12 : i32 to vector<1x256xi32>
    %25 = arith.addi %14, %24 : vector<1x256xi32>
    %26 = arith.select %23, %25, %14 : vector<1x256xi1>, vector<1x256xi32>
    %c16_i32_9 = arith.constant 16 : i32
    %27 = vector.broadcast %c16_i32_9 : i32 to vector<1x256xi32>
    %28 = arith.cmpi sge, %10, %27 : vector<1x256xi32>
    %c256_i32 = arith.constant 256 : i32
    %29 = vector.broadcast %c256_i32 : i32 to vector<1x256xi32>
    %30 = arith.cmpi slt, %10, %29 : vector<1x256xi32>
    %31 = arith.andi %28, %30 : vector<1x256xi1>
    %32 = arith.extui %31 : vector<1x256xi1> to vector<1x256xi32>
    %33 = arith.sitofp %32 : vector<1x256xi32> to vector<1x256xf32>
    %c1_i32_10 = arith.constant 1 : i32
    %34 = vector.broadcast %c1_i32_10 : i32 to vector<1x256xi32>
    %35 = arith.cmpi sge, %26, %34 : vector<1x256xi32>
    %c16_i32_11 = arith.constant 16 : i32
    %36 = vector.broadcast %c16_i32_11 : i32 to vector<1x256xi32>
    %37 = arith.cmpi slt, %26, %36 : vector<1x256xi32>
    %38 = arith.andi %35, %37 : vector<1x256xi1>
    %39 = arith.extui %38 : vector<1x256xi1> to vector<1x256xi32>
    %40 = arith.sitofp %39 : vector<1x256xi32> to vector<1x256xf32>
    %c0_i32_12 = arith.constant 0 : i32
    %41 = vector.broadcast %c0_i32_12 : i32 to vector<1x256xi32>
    %42 = arith.cmpi sge, %10, %41 : vector<1x256xi32>
    %c240_i32 = arith.constant 240 : i32
    %43 = vector.broadcast %c240_i32 : i32 to vector<1x256xi32>
    %44 = arith.cmpi slt, %10, %43 : vector<1x256xi32>
    %45 = arith.andi %42, %44 : vector<1x256xi1>
    %46 = arith.extui %45 : vector<1x256xi1> to vector<1x256xi32>
    %47 = arith.sitofp %46 : vector<1x256xi32> to vector<1x256xf32>
    %c0_i32_13 = arith.constant 0 : i32
    %48 = vector.broadcast %c0_i32_13 : i32 to vector<1x256xi32>
    %49 = arith.cmpi sge, %26, %48 : vector<1x256xi32>
    %c15_i32 = arith.constant 15 : i32
    %50 = vector.broadcast %c15_i32 : i32 to vector<1x256xi32>
    %51 = arith.cmpi slt, %26, %50 : vector<1x256xi32>
    %52 = arith.andi %49, %51 : vector<1x256xi1>
    %53 = arith.extui %52 : vector<1x256xi1> to vector<1x256xi32>
    %54 = arith.sitofp %53 : vector<1x256xi32> to vector<1x256xf32>
    %cst_14 = arith.constant 0.000000e+00 : f32
    %55 = vector.broadcast %cst_14 : f32 to vector<4x256xf32>
    %c17_i32 = arith.constant 17 : i32
    %56 = tpu.dynamic_rotate %9 by %c17_i32 dim 1 : vector<4x256xf32>, i32 -> vector<4x256xf32>
    %57 = arith.mulf %33, %40 : vector<1x256xf32>
    %58 = vector.broadcast %57 : vector<1x256xf32> to vector<4x256xf32>
    %59 = arith.mulf %56, %58 : vector<4x256xf32>
    %c0_15 = arith.constant 0 : index
    %c0_16 = arith.constant 0 : index
    %c0_17 = arith.constant 0 : index
    %60 = vector.load %arg4[%c0_15, %c0_16, %c0_17] : memref<9x4x1xf32, #tpu.memory_space<vmem>>, vector<1x4x1xf32>
    %61 = vector.shape_cast %60 : vector<1x4x1xf32> to vector<4x1xf32>
    %62 = vector.broadcast %61 : vector<4x1xf32> to vector<4x256xf32>
    %63 = arith.mulf %62, %59 : vector<4x256xf32>
    %64 = arith.addf %55, %63 : vector<4x256xf32>
    %c16_i32_18 = arith.constant 16 : i32
    %65 = tpu.dynamic_rotate %9 by %c16_i32_18 dim 1 : vector<4x256xf32>, i32 -> vector<4x256xf32>
    %66 = vector.broadcast %33 : vector<1x256xf32> to vector<4x256xf32>
    %67 = arith.mulf %65, %66 : vector<4x256xf32>
    %c1 = arith.constant 1 : index
    %c0_19 = arith.constant 0 : index
    %c0_20 = arith.constant 0 : index
    %68 = vector.load %arg4[%c1, %c0_19, %c0_20] : memref<9x4x1xf32, #tpu.memory_space<vmem>>, vector<1x4x1xf32>
    %69 = vector.shape_cast %68 : vector<1x4x1xf32> to vector<4x1xf32>
    %70 = vector.broadcast %69 : vector<4x1xf32> to vector<4x256xf32>
    %71 = arith.mulf %70, %67 : vector<4x256xf32>
    %72 = arith.addf %64, %71 : vector<4x256xf32>
    %c15_i32_21 = arith.constant 15 : i32
    %73 = tpu.dynamic_rotate %9 by %c15_i32_21 dim 1 : vector<4x256xf32>, i32 -> vector<4x256xf32>
    %74 = arith.mulf %33, %54 : vector<1x256xf32>
    %75 = vector.broadcast %74 : vector<1x256xf32> to vector<4x256xf32>
    %76 = arith.mulf %73, %75 : vector<4x256xf32>
    %c2 = arith.constant 2 : index
    %c0_22 = arith.constant 0 : index
    %c0_23 = arith.constant 0 : index
    %77 = vector.load %arg4[%c2, %c0_22, %c0_23] : memref<9x4x1xf32, #tpu.memory_space<vmem>>, vector<1x4x1xf32>
    %78 = vector.shape_cast %77 : vector<1x4x1xf32> to vector<4x1xf32>
    %79 = vector.broadcast %78 : vector<4x1xf32> to vector<4x256xf32>
    %80 = arith.mulf %79, %76 : vector<4x256xf32>
    %81 = arith.addf %72, %80 : vector<4x256xf32>
    %c1_i32_24 = arith.constant 1 : i32
    %82 = tpu.dynamic_rotate %9 by %c1_i32_24 dim 1 : vector<4x256xf32>, i32 -> vector<4x256xf32>
    %83 = vector.broadcast %40 : vector<1x256xf32> to vector<4x256xf32>
    %84 = arith.mulf %82, %83 : vector<4x256xf32>
    %c3 = arith.constant 3 : index
    %c0_25 = arith.constant 0 : index
    %c0_26 = arith.constant 0 : index
    %85 = vector.load %arg4[%c3, %c0_25, %c0_26] : memref<9x4x1xf32, #tpu.memory_space<vmem>>, vector<1x4x1xf32>
    %86 = vector.shape_cast %85 : vector<1x4x1xf32> to vector<4x1xf32>
    %87 = vector.broadcast %86 : vector<4x1xf32> to vector<4x256xf32>
    %88 = arith.mulf %87, %84 : vector<4x256xf32>
    %89 = arith.addf %81, %88 : vector<4x256xf32>
    %c4 = arith.constant 4 : index
    %c0_27 = arith.constant 0 : index
    %c0_28 = arith.constant 0 : index
    %90 = vector.load %arg4[%c4, %c0_27, %c0_28] : memref<9x4x1xf32, #tpu.memory_space<vmem>>, vector<1x4x1xf32>
    %91 = vector.shape_cast %90 : vector<1x4x1xf32> to vector<4x1xf32>
    %92 = vector.broadcast %91 : vector<4x1xf32> to vector<4x256xf32>
    %93 = arith.mulf %92, %9 : vector<4x256xf32>
    %94 = arith.addf %89, %93 : vector<4x256xf32>
    %c255_i32 = arith.constant 255 : i32
    %95 = tpu.dynamic_rotate %9 by %c255_i32 dim 1 : vector<4x256xf32>, i32 -> vector<4x256xf32>
    %96 = vector.broadcast %54 : vector<1x256xf32> to vector<4x256xf32>
    %97 = arith.mulf %95, %96 : vector<4x256xf32>
    %c5 = arith.constant 5 : index
    %c0_29 = arith.constant 0 : index
    %c0_30 = arith.constant 0 : index
    %98 = vector.load %arg4[%c5, %c0_29, %c0_30] : memref<9x4x1xf32, #tpu.memory_space<vmem>>, vector<1x4x1xf32>
    %99 = vector.shape_cast %98 : vector<1x4x1xf32> to vector<4x1xf32>
    %100 = vector.broadcast %99 : vector<4x1xf32> to vector<4x256xf32>
    %101 = arith.mulf %100, %97 : vector<4x256xf32>
    %102 = arith.addf %94, %101 : vector<4x256xf32>
    %c241_i32 = arith.constant 241 : i32
    %103 = tpu.dynamic_rotate %9 by %c241_i32 dim 1 : vector<4x256xf32>, i32 -> vector<4x256xf32>
    %104 = arith.mulf %47, %40 : vector<1x256xf32>
    %105 = vector.broadcast %104 : vector<1x256xf32> to vector<4x256xf32>
    %106 = arith.mulf %103, %105 : vector<4x256xf32>
    %c6 = arith.constant 6 : index
    %c0_31 = arith.constant 0 : index
    %c0_32 = arith.constant 0 : index
    %107 = vector.load %arg4[%c6, %c0_31, %c0_32] : memref<9x4x1xf32, #tpu.memory_space<vmem>>, vector<1x4x1xf32>
    %108 = vector.shape_cast %107 : vector<1x4x1xf32> to vector<4x1xf32>
    %109 = vector.broadcast %108 : vector<4x1xf32> to vector<4x256xf32>
    %110 = arith.mulf %109, %106 : vector<4x256xf32>
    %111 = arith.addf %102, %110 : vector<4x256xf32>
    %c240_i32_33 = arith.constant 240 : i32
    %112 = tpu.dynamic_rotate %9 by %c240_i32_33 dim 1 : vector<4x256xf32>, i32 -> vector<4x256xf32>
    %113 = vector.broadcast %47 : vector<1x256xf32> to vector<4x256xf32>
    %114 = arith.mulf %112, %113 : vector<4x256xf32>
    %c7 = arith.constant 7 : index
    %c0_34 = arith.constant 0 : index
    %c0_35 = arith.constant 0 : index
    %115 = vector.load %arg4[%c7, %c0_34, %c0_35] : memref<9x4x1xf32, #tpu.memory_space<vmem>>, vector<1x4x1xf32>
    %116 = vector.shape_cast %115 : vector<1x4x1xf32> to vector<4x1xf32>
    %117 = vector.broadcast %116 : vector<4x1xf32> to vector<4x256xf32>
    %118 = arith.mulf %117, %114 : vector<4x256xf32>
    %119 = arith.addf %111, %118 : vector<4x256xf32>
    %c239_i32 = arith.constant 239 : i32
    %120 = tpu.dynamic_rotate %9 by %c239_i32 dim 1 : vector<4x256xf32>, i32 -> vector<4x256xf32>
    %121 = arith.mulf %47, %54 : vector<1x256xf32>
    %122 = vector.broadcast %121 : vector<1x256xf32> to vector<4x256xf32>
    %123 = arith.mulf %120, %122 : vector<4x256xf32>
    %c8 = arith.constant 8 : index
    %c0_36 = arith.constant 0 : index
    %c0_37 = arith.constant 0 : index
    %124 = vector.load %arg4[%c8, %c0_36, %c0_37] : memref<9x4x1xf32, #tpu.memory_space<vmem>>, vector<1x4x1xf32>
    %125 = vector.shape_cast %124 : vector<1x4x1xf32> to vector<4x1xf32>
    %126 = vector.broadcast %125 : vector<4x1xf32> to vector<4x256xf32>
    %127 = arith.mulf %126, %123 : vector<4x256xf32>
    %128 = arith.addf %119, %127 : vector<4x256xf32>
    %c0_38 = arith.constant 0 : index
    %c0_39 = arith.constant 0 : index
    %129 = vector.load %arg5[%c0_38, %c0_39] : memref<8x4xbf16, #tpu.memory_space<vmem>>, vector<8x4xbf16>
    %130 = arith.truncf %128 : vector<4x256xf32> to vector<4x256xbf16>
    %cst_40 = arith.constant dense<0.000000e+00> : vector<8x256xf32>
    %131 = tpu.matmul %129, %130, %cst_40 {dimension_numbers = #tpu.dot_dimension_numbers<[1], [0], [0], [1], [0, 0, 1, 1], [], []>} : vector<8x4xbf16>, vector<4x256xbf16>, vector<8x256xf32> -> vector<8x256xf32>
    %cst_41 = arith.constant dense<0.000000e+00> : vector<8xf32>
    %132 = vector.multi_reduction <add>, %131, %cst_41 [1] : vector<8x256xf32> to vector<8xf32>
    %133 = vector.shape_cast %132 : vector<8xf32> to vector<8x1xf32>
    %134 = arith.mulf %131, %131 : vector<8x256xf32>
    %cst_42 = arith.constant dense<0.000000e+00> : vector<8xf32>
    %135 = vector.multi_reduction <add>, %134, %cst_42 [1] : vector<8x256xf32> to vector<8xf32>
    %136 = vector.shape_cast %135 : vector<8xf32> to vector<8x1xf32>
    %137 = tpu.concatenate %133, %136 in 1 : vector<8x1xf32>, vector<8x1xf32> -> vector<8x2xf32>
    %c0_43 = arith.constant 0 : index
    %c0_44 = arith.constant 0 : index
    %c0_45 = arith.constant 0 : index
    %138 = vector.load %arg7[%c0_43, %c0_44, %c0_45] : memref<1x8x2xf32, #tpu.memory_space<vmem>>, vector<1x8x2xf32>
    %139 = vector.shape_cast %138 : vector<1x8x2xf32> to vector<8x2xf32>
    %140 = vector.shape_cast %137 : vector<8x2xf32> to vector<1x8x2xf32>
    tpu.vector_store %arg7[%c0_43, %c0_44, %c0_45], %140 {strides = array<i32>} : memref<1x8x2xf32, #tpu.memory_space<vmem>>, vector<1x8x2xf32>,
    %141 = arith.truncf %131 : vector<8x256xf32> to vector<8x256xbf16>
    %c0_46 = arith.constant 0 : index
    %c0_47 = arith.constant 0 : index
    %c0_48 = arith.constant 0 : index
    %142 = vector.load %arg6[%c0_46, %c0_47, %c0_48] : memref<1x8x256xbf16, #tpu.memory_space<vmem>>, vector<1x8x256xbf16>
    %143 = vector.shape_cast %142 : vector<1x8x256xbf16> to vector<8x256xbf16>
    %144 = vector.shape_cast %141 : vector<8x256xbf16> to vector<1x8x256xbf16>
    tpu.vector_store %arg6[%c0_46, %c0_47, %c0_48], %144 {strides = array<i32>} : memref<1x8x256xbf16, #tpu.memory_space<vmem>>, vector<1x8x256xbf16>,
    return
  }
  func.func @transform_0(%arg0: i32) -> (i32, i32, i32) {
    %c0_i32 = arith.constant 0 : i32
    %c0_i32_0 = arith.constant 0 : i32
    %c0_i32_1 = arith.constant 0 : i32
    return %arg0, %c0_i32, %c0_i32_0 : i32, i32, i32
  }
  func.func @transform_1(%arg0: i32) -> (i32, i32) {
    %c0_i32 = arith.constant 0 : i32
    %c0_i32_0 = arith.constant 0 : i32
    %c0_i32_1 = arith.constant 0 : i32
    return %c0_i32, %c0_i32_0 : i32, i32
  }
  func.func @transform_2(%arg0: i32) -> (i32, i32) {
    %c0_i32 = arith.constant 0 : i32
    %c0_i32_0 = arith.constant 0 : i32
    %c0_i32_1 = arith.constant 0 : i32
    return %c0_i32, %c0_i32_0 : i32, i32
  }
  func.func @transform_3(%arg0: i32) -> (i32, i32, i32) {
    %c0_i32 = arith.constant 0 : i32
    %c0_i32_0 = arith.constant 0 : i32
    %c0_i32_1 = arith.constant 0 : i32
    %c0_i32_2 = arith.constant 0 : i32
    return %c0_i32, %c0_i32_0, %c0_i32_1 : i32, i32, i32
  }
  func.func @transform_4(%arg0: i32) -> (i32, i32) {
    %c0_i32 = arith.constant 0 : i32
    %c0_i32_0 = arith.constant 0 : i32
    %c0_i32_1 = arith.constant 0 : i32
    return %c0_i32, %c0_i32_0 : i32, i32
  }
  func.func @transform_5(%arg0: i32) -> (i32, i32, i32) {
    %c0_i32 = arith.constant 0 : i32
    %c0_i32_0 = arith.constant 0 : i32
    %c0_i32_1 = arith.constant 0 : i32
    return %arg0, %c0_i32, %c0_i32_0 : i32, i32, i32
  }
  func.func @transform_6(%arg0: i32) -> (i32, i32, i32) {
    %c0_i32 = arith.constant 0 : i32
    %c0_i32_0 = arith.constant 0 : i32
    %c0_i32_1 = arith.constant 0 : i32
    return %arg0, %c0_i32, %c0_i32_0 : i32, i32, i32
  }
}

module attributes {stable_mosaic.version = 11 : i64} {
  func.func @_bn_apply_kernel(%arg0: i32, %arg1: memref<1x8x256xbf16, #tpu.memory_space<vmem>>, %arg2: memref<8x1xf32, #tpu.memory_space<vmem>>, %arg3: memref<8x1xf32, #tpu.memory_space<vmem>>, %arg4: memref<1x8x256xf32, #tpu.memory_space<vmem>>) attributes {dimension_semantics = [#tpu.dimension_semantics<parallel>], iteration_bounds = array<i64: 2>, scalar_prefetch = 0 : i64, scratch_operands = 0 : i64, tpu.core_type = #tpu.core_type<tc>, window_params = [{transform_indices = @transform_0, window_bounds = array<i64: 1, 8, 256>}, {pipeline_mode = #tpu.pipeline_mode<synchronous>, transform_indices = @transform_1, window_bounds = array<i64: 8, 1>}, {pipeline_mode = #tpu.pipeline_mode<synchronous>, transform_indices = @transform_2, window_bounds = array<i64: 8, 1>}, {transform_indices = @transform_3, window_bounds = array<i64: 1, 8, 256>}]} {
    %c0 = arith.constant 0 : index
    %c0_0 = arith.constant 0 : index
    %c0_1 = arith.constant 0 : index
    %0 = vector.load %arg1[%c0, %c0_0, %c0_1] : memref<1x8x256xbf16, #tpu.memory_space<vmem>>, vector<1x8x256xbf16>
    %1 = vector.shape_cast %0 : vector<1x8x256xbf16> to vector<8x256xbf16>
    %2 = arith.extf %1 : vector<8x256xbf16> to vector<8x256xf32>
    %c0_2 = arith.constant 0 : index
    %c0_3 = arith.constant 0 : index
    %3 = vector.load %arg2[%c0_2, %c0_3] : memref<8x1xf32, #tpu.memory_space<vmem>>, vector<8x1xf32>
    %4 = vector.broadcast %3 : vector<8x1xf32> to vector<8x256xf32>
    %5 = arith.mulf %2, %4 : vector<8x256xf32>
    %c0_4 = arith.constant 0 : index
    %c0_5 = arith.constant 0 : index
    %6 = vector.load %arg3[%c0_4, %c0_5] : memref<8x1xf32, #tpu.memory_space<vmem>>, vector<8x1xf32>
    %7 = vector.broadcast %6 : vector<8x1xf32> to vector<8x256xf32>
    %8 = arith.addf %5, %7 : vector<8x256xf32>
    %c0_6 = arith.constant 0 : index
    %c0_7 = arith.constant 0 : index
    %c0_8 = arith.constant 0 : index
    %9 = vector.load %arg4[%c0_6, %c0_7, %c0_8] : memref<1x8x256xf32, #tpu.memory_space<vmem>>, vector<1x8x256xf32>
    %10 = vector.shape_cast %9 : vector<1x8x256xf32> to vector<8x256xf32>
    %11 = vector.shape_cast %8 : vector<8x256xf32> to vector<1x8x256xf32>
    tpu.vector_store %arg4[%c0_6, %c0_7, %c0_8], %11 {strides = array<i32>} : memref<1x8x256xf32, #tpu.memory_space<vmem>>, vector<1x8x256xf32>,
    return
  }
  func.func @transform_0(%arg0: i32) -> (i32, i32, i32) {
    %c0_i32 = arith.constant 0 : i32
    %c0_i32_0 = arith.constant 0 : i32
    %c0_i32_1 = arith.constant 0 : i32
    return %arg0, %c0_i32, %c0_i32_0 : i32, i32, i32
  }
  func.func @transform_1(%arg0: i32) -> (i32, i32) {
    %c0_i32 = arith.constant 0 : i32
    %c0_i32_0 = arith.constant 0 : i32
    %c0_i32_1 = arith.constant 0 : i32
    return %c0_i32, %c0_i32_0 : i32, i32
  }
  func.func @transform_2(%arg0: i32) -> (i32, i32) {
    %c0_i32 = arith.constant 0 : i32
    %c0_i32_0 = arith.constant 0 : i32
    %c0_i32_1 = arith.constant 0 : i32
    return %c0_i32, %c0_i32_0 : i32, i32
  }
  func.func @transform_3(%arg0: i32) -> (i32, i32, i32) {
    %c0_i32 = arith.constant 0 : i32
    %c0_i32_0 = arith.constant 0 : i32
    %c0_i32_1 = arith.constant 0 : i32
    return %arg0, %c0_i32, %c0_i32_0 : i32, i32, i32
  }
}

module attributes {stable_mosaic.version = 11 : i64} {
  func.func @_conv_block_kernel(%arg0: i32, %arg1: memref<1x8x256xbf16, #tpu.memory_space<vmem>>, %arg2: memref<8x1xf32, #tpu.memory_space<vmem>>, %arg3: memref<8x1xf32, #tpu.memory_space<vmem>>, %arg4: memref<9x8x1xf32, #tpu.memory_space<vmem>>, %arg5: memref<8x8xbf16, #tpu.memory_space<vmem>>, %arg6: memref<1x8x256xbf16, #tpu.memory_space<vmem>>, %arg7: memref<1x8x2xf32, #tpu.memory_space<vmem>>) attributes {dimension_semantics = [#tpu.dimension_semantics<parallel>], iteration_bounds = array<i64: 2>, scalar_prefetch = 0 : i64, scratch_operands = 0 : i64, tpu.core_type = #tpu.core_type<tc>, window_params = [{transform_indices = @transform_0, window_bounds = array<i64: 1, 8, 256>}, {pipeline_mode = #tpu.pipeline_mode<synchronous>, transform_indices = @transform_1, window_bounds = array<i64: 8, 1>}, {pipeline_mode = #tpu.pipeline_mode<synchronous>, transform_indices = @transform_2, window_bounds = array<i64: 8, 1>}, {pipeline_mode = #tpu.pipeline_mode<synchronous>, transform_indices = @transform_3, window_bounds = array<i64: 9, 8, 1>}, {pipeline_mode = #tpu.pipeline_mode<synchronous>, transform_indices = @transform_4, window_bounds = array<i64: 8, 8>}, {transform_indices = @transform_5, window_bounds = array<i64: 1, 8, 256>}, {transform_indices = @transform_6, window_bounds = array<i64: 1, 8, 2>}]} {
    %c0 = arith.constant 0 : index
    %c0_0 = arith.constant 0 : index
    %c0_1 = arith.constant 0 : index
    %0 = vector.load %arg1[%c0, %c0_0, %c0_1] : memref<1x8x256xbf16, #tpu.memory_space<vmem>>, vector<1x8x256xbf16>
    %1 = vector.shape_cast %0 : vector<1x8x256xbf16> to vector<8x256xbf16>
    %2 = arith.extf %1 : vector<8x256xbf16> to vector<8x256xf32>
    %c0_2 = arith.constant 0 : index
    %c0_3 = arith.constant 0 : index
    %3 = vector.load %arg2[%c0_2, %c0_3] : memref<8x1xf32, #tpu.memory_space<vmem>>, vector<8x1xf32>
    %4 = vector.broadcast %3 : vector<8x1xf32> to vector<8x256xf32>
    %5 = arith.mulf %2, %4 : vector<8x256xf32>
    %c0_4 = arith.constant 0 : index
    %c0_5 = arith.constant 0 : index
    %6 = vector.load %arg3[%c0_4, %c0_5] : memref<8x1xf32, #tpu.memory_space<vmem>>, vector<8x1xf32>
    %7 = vector.broadcast %6 : vector<8x1xf32> to vector<8x256xf32>
    %8 = arith.addf %5, %7 : vector<8x256xf32>
    %cst = arith.constant 0.000000e+00 : f32
    %9 = vector.broadcast %cst : f32 to vector<8x256xf32>
    %10 = arith.maximumf %8, %9 : vector<8x256xf32>
    %11 = tpu.iota {dimensions = array<i32: 1>} : vector<1x256xi32>
    %c16_i32 = arith.constant 16 : i32
    %c0_i32 = arith.constant 0 : i32
    %12 = arith.cmpi eq, %c16_i32, %c0_i32 : i32
    %c1_i32 = arith.constant 1 : i32
    %13 = arith.select %12, %c1_i32, %c16_i32 : i32
    %14 = vector.broadcast %13 : i32 to vector<1x256xi32>
    %15 = arith.remsi %11, %14 : vector<1x256xi32>
    %c0_i32_6 = arith.constant 0 : i32
    %16 = vector.broadcast %c0_i32_6 : i32 to vector<1x256xi32>
    %17 = arith.cmpi ne, %15, %16 : vector<1x256xi32>
    %c0_i32_7 = arith.constant 0 : i32
    %18 = vector.broadcast %c0_i32_7 : i32 to vector<1x256xi32>
    %19 = arith.cmpi slt, %15, %18 : vector<1x256xi32>
    %c0_i32_8 = arith.constant 0 : i32
    %20 = arith.cmpi slt, %13, %c0_i32_8 : i32
    %21 = vector.broadcast %20 : i1 to vector<1x256xi1>
    %22 = vector.broadcast %21 : vector<1x256xi1> to vector<1x256xi1>
    %23 = arith.xori %19, %22 : vector<1x256xi1>
    %24 = arith.andi %23, %17 : vector<1x256xi1>
    %25 = vector.broadcast %13 : i32 to vector<1x256xi32>
    %26 = arith.addi %15, %25 : vector<1x256xi32>
    %27 = arith.select %24, %26, %15 : vector<1x256xi1>, vector<1x256xi32>
    %c16_i32_9 = arith.constant 16 : i32
    %28 = vector.broadcast %c16_i32_9 : i32 to vector<1x256xi32>
    %29 = arith.cmpi sge, %11, %28 : vector<1x256xi32>
    %c256_i32 = arith.constant 256 : i32
    %30 = vector.broadcast %c256_i32 : i32 to vector<1x256xi32>
    %31 = arith.cmpi slt, %11, %30 : vector<1x256xi32>
    %32 = arith.andi %29, %31 : vector<1x256xi1>
    %33 = arith.extui %32 : vector<1x256xi1> to vector<1x256xi32>
    %34 = arith.sitofp %33 : vector<1x256xi32> to vector<1x256xf32>
    %c1_i32_10 = arith.constant 1 : i32
    %35 = vector.broadcast %c1_i32_10 : i32 to vector<1x256xi32>
    %36 = arith.cmpi sge, %27, %35 : vector<1x256xi32>
    %c16_i32_11 = arith.constant 16 : i32
    %37 = vector.broadcast %c16_i32_11 : i32 to vector<1x256xi32>
    %38 = arith.cmpi slt, %27, %37 : vector<1x256xi32>
    %39 = arith.andi %36, %38 : vector<1x256xi1>
    %40 = arith.extui %39 : vector<1x256xi1> to vector<1x256xi32>
    %41 = arith.sitofp %40 : vector<1x256xi32> to vector<1x256xf32>
    %c0_i32_12 = arith.constant 0 : i32
    %42 = vector.broadcast %c0_i32_12 : i32 to vector<1x256xi32>
    %43 = arith.cmpi sge, %11, %42 : vector<1x256xi32>
    %c240_i32 = arith.constant 240 : i32
    %44 = vector.broadcast %c240_i32 : i32 to vector<1x256xi32>
    %45 = arith.cmpi slt, %11, %44 : vector<1x256xi32>
    %46 = arith.andi %43, %45 : vector<1x256xi1>
    %47 = arith.extui %46 : vector<1x256xi1> to vector<1x256xi32>
    %48 = arith.sitofp %47 : vector<1x256xi32> to vector<1x256xf32>
    %c0_i32_13 = arith.constant 0 : i32
    %49 = vector.broadcast %c0_i32_13 : i32 to vector<1x256xi32>
    %50 = arith.cmpi sge, %27, %49 : vector<1x256xi32>
    %c15_i32 = arith.constant 15 : i32
    %51 = vector.broadcast %c15_i32 : i32 to vector<1x256xi32>
    %52 = arith.cmpi slt, %27, %51 : vector<1x256xi32>
    %53 = arith.andi %50, %52 : vector<1x256xi1>
    %54 = arith.extui %53 : vector<1x256xi1> to vector<1x256xi32>
    %55 = arith.sitofp %54 : vector<1x256xi32> to vector<1x256xf32>
    %cst_14 = arith.constant 0.000000e+00 : f32
    %56 = vector.broadcast %cst_14 : f32 to vector<8x256xf32>
    %c17_i32 = arith.constant 17 : i32
    %57 = tpu.dynamic_rotate %10 by %c17_i32 dim 1 : vector<8x256xf32>, i32 -> vector<8x256xf32>
    %58 = arith.mulf %34, %41 : vector<1x256xf32>
    %59 = vector.broadcast %58 : vector<1x256xf32> to vector<8x256xf32>
    %60 = arith.mulf %57, %59 : vector<8x256xf32>
    %c0_15 = arith.constant 0 : index
    %c0_16 = arith.constant 0 : index
    %c0_17 = arith.constant 0 : index
    %61 = vector.load %arg4[%c0_15, %c0_16, %c0_17] : memref<9x8x1xf32, #tpu.memory_space<vmem>>, vector<1x8x1xf32>
    %62 = vector.shape_cast %61 : vector<1x8x1xf32> to vector<8x1xf32>
    %63 = vector.broadcast %62 : vector<8x1xf32> to vector<8x256xf32>
    %64 = arith.mulf %63, %60 : vector<8x256xf32>
    %65 = arith.addf %56, %64 : vector<8x256xf32>
    %c16_i32_18 = arith.constant 16 : i32
    %66 = tpu.dynamic_rotate %10 by %c16_i32_18 dim 1 : vector<8x256xf32>, i32 -> vector<8x256xf32>
    %67 = vector.broadcast %34 : vector<1x256xf32> to vector<8x256xf32>
    %68 = arith.mulf %66, %67 : vector<8x256xf32>
    %c1 = arith.constant 1 : index
    %c0_19 = arith.constant 0 : index
    %c0_20 = arith.constant 0 : index
    %69 = vector.load %arg4[%c1, %c0_19, %c0_20] : memref<9x8x1xf32, #tpu.memory_space<vmem>>, vector<1x8x1xf32>
    %70 = vector.shape_cast %69 : vector<1x8x1xf32> to vector<8x1xf32>
    %71 = vector.broadcast %70 : vector<8x1xf32> to vector<8x256xf32>
    %72 = arith.mulf %71, %68 : vector<8x256xf32>
    %73 = arith.addf %65, %72 : vector<8x256xf32>
    %c15_i32_21 = arith.constant 15 : i32
    %74 = tpu.dynamic_rotate %10 by %c15_i32_21 dim 1 : vector<8x256xf32>, i32 -> vector<8x256xf32>
    %75 = arith.mulf %34, %55 : vector<1x256xf32>
    %76 = vector.broadcast %75 : vector<1x256xf32> to vector<8x256xf32>
    %77 = arith.mulf %74, %76 : vector<8x256xf32>
    %c2 = arith.constant 2 : index
    %c0_22 = arith.constant 0 : index
    %c0_23 = arith.constant 0 : index
    %78 = vector.load %arg4[%c2, %c0_22, %c0_23] : memref<9x8x1xf32, #tpu.memory_space<vmem>>, vector<1x8x1xf32>
    %79 = vector.shape_cast %78 : vector<1x8x1xf32> to vector<8x1xf32>
    %80 = vector.broadcast %79 : vector<8x1xf32> to vector<8x256xf32>
    %81 = arith.mulf %80, %77 : vector<8x256xf32>
    %82 = arith.addf %73, %81 : vector<8x256xf32>
    %c1_i32_24 = arith.constant 1 : i32
    %83 = tpu.dynamic_rotate %10 by %c1_i32_24 dim 1 : vector<8x256xf32>, i32 -> vector<8x256xf32>
    %84 = vector.broadcast %41 : vector<1x256xf32> to vector<8x256xf32>
    %85 = arith.mulf %83, %84 : vector<8x256xf32>
    %c3 = arith.constant 3 : index
    %c0_25 = arith.constant 0 : index
    %c0_26 = arith.constant 0 : index
    %86 = vector.load %arg4[%c3, %c0_25, %c0_26] : memref<9x8x1xf32, #tpu.memory_space<vmem>>, vector<1x8x1xf32>
    %87 = vector.shape_cast %86 : vector<1x8x1xf32> to vector<8x1xf32>
    %88 = vector.broadcast %87 : vector<8x1xf32> to vector<8x256xf32>
    %89 = arith.mulf %88, %85 : vector<8x256xf32>
    %90 = arith.addf %82, %89 : vector<8x256xf32>
    %c4 = arith.constant 4 : index
    %c0_27 = arith.constant 0 : index
    %c0_28 = arith.constant 0 : index
    %91 = vector.load %arg4[%c4, %c0_27, %c0_28] : memref<9x8x1xf32, #tpu.memory_space<vmem>>, vector<1x8x1xf32>
    %92 = vector.shape_cast %91 : vector<1x8x1xf32> to vector<8x1xf32>
    %93 = vector.broadcast %92 : vector<8x1xf32> to vector<8x256xf32>
    %94 = arith.mulf %93, %10 : vector<8x256xf32>
    %95 = arith.addf %90, %94 : vector<8x256xf32>
    %c255_i32 = arith.constant 255 : i32
    %96 = tpu.dynamic_rotate %10 by %c255_i32 dim 1 : vector<8x256xf32>, i32 -> vector<8x256xf32>
    %97 = vector.broadcast %55 : vector<1x256xf32> to vector<8x256xf32>
    %98 = arith.mulf %96, %97 : vector<8x256xf32>
    %c5 = arith.constant 5 : index
    %c0_29 = arith.constant 0 : index
    %c0_30 = arith.constant 0 : index
    %99 = vector.load %arg4[%c5, %c0_29, %c0_30] : memref<9x8x1xf32, #tpu.memory_space<vmem>>, vector<1x8x1xf32>
    %100 = vector.shape_cast %99 : vector<1x8x1xf32> to vector<8x1xf32>
    %101 = vector.broadcast %100 : vector<8x1xf32> to vector<8x256xf32>
    %102 = arith.mulf %101, %98 : vector<8x256xf32>
    %103 = arith.addf %95, %102 : vector<8x256xf32>
    %c241_i32 = arith.constant 241 : i32
    %104 = tpu.dynamic_rotate %10 by %c241_i32 dim 1 : vector<8x256xf32>, i32 -> vector<8x256xf32>
    %105 = arith.mulf %48, %41 : vector<1x256xf32>
    %106 = vector.broadcast %105 : vector<1x256xf32> to vector<8x256xf32>
    %107 = arith.mulf %104, %106 : vector<8x256xf32>
    %c6 = arith.constant 6 : index
    %c0_31 = arith.constant 0 : index
    %c0_32 = arith.constant 0 : index
    %108 = vector.load %arg4[%c6, %c0_31, %c0_32] : memref<9x8x1xf32, #tpu.memory_space<vmem>>, vector<1x8x1xf32>
    %109 = vector.shape_cast %108 : vector<1x8x1xf32> to vector<8x1xf32>
    %110 = vector.broadcast %109 : vector<8x1xf32> to vector<8x256xf32>
    %111 = arith.mulf %110, %107 : vector<8x256xf32>
    %112 = arith.addf %103, %111 : vector<8x256xf32>
    %c240_i32_33 = arith.constant 240 : i32
    %113 = tpu.dynamic_rotate %10 by %c240_i32_33 dim 1 : vector<8x256xf32>, i32 -> vector<8x256xf32>
    %114 = vector.broadcast %48 : vector<1x256xf32> to vector<8x256xf32>
    %115 = arith.mulf %113, %114 : vector<8x256xf32>
    %c7 = arith.constant 7 : index
    %c0_34 = arith.constant 0 : index
    %c0_35 = arith.constant 0 : index
    %116 = vector.load %arg4[%c7, %c0_34, %c0_35] : memref<9x8x1xf32, #tpu.memory_space<vmem>>, vector<1x8x1xf32>
    %117 = vector.shape_cast %116 : vector<1x8x1xf32> to vector<8x1xf32>
    %118 = vector.broadcast %117 : vector<8x1xf32> to vector<8x256xf32>
    %119 = arith.mulf %118, %115 : vector<8x256xf32>
    %120 = arith.addf %112, %119 : vector<8x256xf32>
    %c239_i32 = arith.constant 239 : i32
    %121 = tpu.dynamic_rotate %10 by %c239_i32 dim 1 : vector<8x256xf32>, i32 -> vector<8x256xf32>
    %122 = arith.mulf %48, %55 : vector<1x256xf32>
    %123 = vector.broadcast %122 : vector<1x256xf32> to vector<8x256xf32>
    %124 = arith.mulf %121, %123 : vector<8x256xf32>
    %c8 = arith.constant 8 : index
    %c0_36 = arith.constant 0 : index
    %c0_37 = arith.constant 0 : index
    %125 = vector.load %arg4[%c8, %c0_36, %c0_37] : memref<9x8x1xf32, #tpu.memory_space<vmem>>, vector<1x8x1xf32>
    %126 = vector.shape_cast %125 : vector<1x8x1xf32> to vector<8x1xf32>
    %127 = vector.broadcast %126 : vector<8x1xf32> to vector<8x256xf32>
    %128 = arith.mulf %127, %124 : vector<8x256xf32>
    %129 = arith.addf %120, %128 : vector<8x256xf32>
    %c0_38 = arith.constant 0 : index
    %c0_39 = arith.constant 0 : index
    %130 = vector.load %arg5[%c0_38, %c0_39] : memref<8x8xbf16, #tpu.memory_space<vmem>>, vector<8x8xbf16>
    %131 = arith.truncf %129 : vector<8x256xf32> to vector<8x256xbf16>
    %cst_40 = arith.constant dense<0.000000e+00> : vector<8x256xf32>
    %132 = tpu.matmul %130, %131, %cst_40 {dimension_numbers = #tpu.dot_dimension_numbers<[1], [0], [0], [1], [0, 0, 1, 1], [], []>} : vector<8x8xbf16>, vector<8x256xbf16>, vector<8x256xf32> -> vector<8x256xf32>
    %cst_41 = arith.constant dense<0.000000e+00> : vector<8xf32>
    %133 = vector.multi_reduction <add>, %132, %cst_41 [1] : vector<8x256xf32> to vector<8xf32>
    %134 = vector.shape_cast %133 : vector<8xf32> to vector<8x1xf32>
    %135 = arith.mulf %132, %132 : vector<8x256xf32>
    %cst_42 = arith.constant dense<0.000000e+00> : vector<8xf32>
    %136 = vector.multi_reduction <add>, %135, %cst_42 [1] : vector<8x256xf32> to vector<8xf32>
    %137 = vector.shape_cast %136 : vector<8xf32> to vector<8x1xf32>
    %138 = tpu.concatenate %134, %137 in 1 : vector<8x1xf32>, vector<8x1xf32> -> vector<8x2xf32>
    %c0_43 = arith.constant 0 : index
    %c0_44 = arith.constant 0 : index
    %c0_45 = arith.constant 0 : index
    %139 = vector.load %arg7[%c0_43, %c0_44, %c0_45] : memref<1x8x2xf32, #tpu.memory_space<vmem>>, vector<1x8x2xf32>
    %140 = vector.shape_cast %139 : vector<1x8x2xf32> to vector<8x2xf32>
    %141 = vector.shape_cast %138 : vector<8x2xf32> to vector<1x8x2xf32>
    tpu.vector_store %arg7[%c0_43, %c0_44, %c0_45], %141 {strides = array<i32>} : memref<1x8x2xf32, #tpu.memory_space<vmem>>, vector<1x8x2xf32>,
    %142 = arith.truncf %132 : vector<8x256xf32> to vector<8x256xbf16>
    %c0_46 = arith.constant 0 : index
    %c0_47 = arith.constant 0 : index
    %c0_48 = arith.constant 0 : index
    %143 = vector.load %arg6[%c0_46, %c0_47, %c0_48] : memref<1x8x256xbf16, #tpu.memory_space<vmem>>, vector<1x8x256xbf16>
    %144 = vector.shape_cast %143 : vector<1x8x256xbf16> to vector<8x256xbf16>
    %145 = vector.shape_cast %142 : vector<8x256xbf16> to vector<1x8x256xbf16>
    tpu.vector_store %arg6[%c0_46, %c0_47, %c0_48], %145 {strides = array<i32>} : memref<1x8x256xbf16, #tpu.memory_space<vmem>>, vector<1x8x256xbf16>,
    return
  }
  func.func @transform_0(%arg0: i32) -> (i32, i32, i32) {
    %c0_i32 = arith.constant 0 : i32
    %c0_i32_0 = arith.constant 0 : i32
    %c0_i32_1 = arith.constant 0 : i32
    return %arg0, %c0_i32, %c0_i32_0 : i32, i32, i32
  }
  func.func @transform_1(%arg0: i32) -> (i32, i32) {
    %c0_i32 = arith.constant 0 : i32
    %c0_i32_0 = arith.constant 0 : i32
    %c0_i32_1 = arith.constant 0 : i32
    return %c0_i32, %c0_i32_0 : i32, i32
  }
  func.func @transform_2(%arg0: i32) -> (i32, i32) {
    %c0_i32 = arith.constant 0 : i32
    %c0_i32_0 = arith.constant 0 : i32
    %c0_i32_1 = arith.constant 0 : i32
    return %c0_i32, %c0_i32_0 : i32, i32
  }
  func.func @transform_3(%arg0: i32) -> (i32, i32, i32) {
    %c0_i32 = arith.constant 0 : i32
    %c0_i32_0 = arith.constant 0 : i32
    %c0_i32_1 = arith.constant 0 : i32
    %c0_i32_2 = arith.constant 0 : i32
    return %c0_i32, %c0_i32_0, %c0_i32_1 : i32, i32, i32
  }
  func.func @transform_4(%arg0: i32) -> (i32, i32) {
    %c0_i32 = arith.constant 0 : i32
    %c0_i32_0 = arith.constant 0 : i32
    %c0_i32_1 = arith.constant 0 : i32
    return %c0_i32, %c0_i32_0 : i32, i32
  }
  func.func @transform_5(%arg0: i32) -> (i32, i32, i32) {
    %c0_i32 = arith.constant 0 : i32
    %c0_i32_0 = arith.constant 0 : i32
    %c0_i32_1 = arith.constant 0 : i32
    return %arg0, %c0_i32, %c0_i32_0 : i32, i32, i32
  }
  func.func @transform_6(%arg0: i32) -> (i32, i32, i32) {
    %c0_i32 = arith.constant 0 : i32
    %c0_i32_0 = arith.constant 0 : i32
    %c0_i32_1 = arith.constant 0 : i32
    return %arg0, %c0_i32, %c0_i32_0 : i32, i32, i32
  }
}

</mosaic_0001>

<llo_original>
// kernel: sharp_sep_conv.5
$region0: #{sharp_sep_conv.5}
  #allocation0 [shape = 'u32[]', space=smem, size = 0x4, offset = 0x4, fixed_abs, tag = 'smem constant byte address 0x4 - core index']
  #allocation1 [shape = 'u32[72,128]{1,0:T(1,128)}', space=vmem, size = 0x9000, scoped, tag = 'internal scratch']
  %s0 = inlined_call_operand.vmem [shape: bf16[2,8,256], index: 0, kind: input, shape index: {}]
  %s1 = inlined_call_operand.vmem [shape: f32[8,1], index: 1, kind: input, shape index: {}]
  %s2 = inlined_call_operand.vmem [shape: f32[8,1], index: 2, kind: input, shape index: {}]
  %s3 = inlined_call_operand.vmem [shape: f32[2,8,256], index: 3, kind: output, shape index: {}]
  %s4 = sld [smem:[#allocation0]]
  $region45: #{sharp_sep_conv.5} parent=0
    _
  %s6 = ssub.s32 1, %s4
  %s7 = scalar_select 0, %s6, %s4
  loop: start=0, step=1, limit=4
  $region2: #{sharp_sep_conv.5} parent=0 // loop_pre_header
    _
  $region3: #{sharp_sep_conv.5} parent=0 // loop_header
    %s9 = sphi 0, %s13
    %p10 = scmp.ge.s32.totalorder %s9, 4
    %s19 = sphi 0, %s21
    %s22 = sphi 0, %s19
    %s23 = sphi 0, %s22
    %s39 = sphi 0, %s23
    %s43 = sphi 0, %s43
    %s45 = sphi 0, %s43
    %s46 = sphi 0, %s45
    %s60 = sphi 0, %s46
    %s64 = sphi 0, %s64
    %s66 = sphi 0, %s64
    %s67 = sphi 0, %s66
    %s81 = sphi 0, %s67
    %s87 = sphi 0, %s89
    %s90 = sphi 0, %s87
    %s91 = sphi 0, %s90
    %s107 = sphi 0, %s91
  $region4: #{sharp_sep_conv.5} parent=0 // loop_header_branch
    %12 = sbr.rel (%p10) target = $region8
  $region5: #{sharp_sep_conv.5} parent=0 // loop_body
    %s14 = ssub.s32 %s9, 1
    %s15 = ssub.s32 %s9, 2
    %s16 = sadd.s32 %s9, 1
    %s17 = ssub.s32 %s9, %s16
    %p18 = scmp.eq.s32.totalorder %s17, 0
    %s20 = sadd.s32 %s19, 1
    %s21 = scalar_select %p18, %s19, %s20
    %p24 = pneg %p18
    %p25 = scmp.eq.s32.totalorder %s9, 1
    %p26 = por %p24, %p25
    %p27 = scmp.ne.s32.totalorder %s19, %s22
    %p28 = scmp.eq.s32.totalorder %s9, 0
    %p29 = por %p27, %p28
    %p30 = scmp.ne.s32.totalorder %s19, %s22
    %p31 = scmp.eq.s32.totalorder %s14, 1
    %p32 = por %p30, %p31
    %p33 = scmp.ne.s32.totalorder %s22, %s23
    %p34 = scmp.eq.s32.totalorder %s14, 0
    %p35 = por %p33, %p34
    %p36 = scmp.ne.s32.totalorder %s22, %s23
    %p37 = scmp.eq.s32.totalorder %s15, 1
    %p38 = por %p36, %p37
    %p40 = scmp.ne.s32.totalorder %s23, %s39
    %p41 = scmp.eq.s32.totalorder %s15, 0
    %p42 = por %p40, %p41
    %s44 = sadd.s32 %s43, 1
    %p47 = scmp.eq.s32.totalorder %s9, 1
    %p48 = scmp.ne.s32.totalorder %s43, %s45
    %p49 = scmp.eq.s32.totalorder %s9, 0
    %p50 = por %p48, %p49
    %p51 = scmp.ne.s32.totalorder %s43, %s45
    %p52 = scmp.eq.s32.totalorder %s14, 1
    %p53 = por %p51, %p52
    %p54 = scmp.ne.s32.totalorder %s45, %s46
    %p55 = scmp.eq.s32.totalorder %s14, 0
    %p56 = por %p54, %p55
    %p57 = scmp.ne.s32.totalorder %s45, %s46
    %p58 = scmp.eq.s32.totalorder %s15, 1
    %p59 = por %p57, %p58
    %p61 = scmp.ne.s32.totalorder %s46, %s60
    %p62 = scmp.eq.s32.totalorder %s15, 0
    %p63 = por %p61, %p62
    %s65 = sadd.s32 %s64, 1
    %p68 = scmp.eq.s32.totalorder %s9, 1
    %p69 = scmp.ne.s32.totalorder %s64, %s66
    %p70 = scmp.eq.s32.totalorder %s9, 0
    %p71 = por %p69, %p70
    %p72 = scmp.ne.s32.totalorder %s64, %s66
    %p73 = scmp.eq.s32.totalorder %s14, 1
    %p74 = por %p72, %p73
    %p75 = scmp.ne.s32.totalorder %s66, %s67
    %p76 = scmp.eq.s32.totalorder %s14, 0
    %p77 = por %p75, %p76
    %p78 = scmp.ne.s32.totalorder %s66, %s67
    %p79 = scmp.eq.s32.totalorder %s15, 1
    %p80 = por %p78, %p79
    %p82 = scmp.ne.s32.totalorder %s67, %s81
    %p83 = scmp.eq.s32.totalorder %s15, 0
    %p84 = por %p82, %p83
    %s85 = ssub.s32 %s9, %s16
    %p86 = scmp.eq.s32.totalorder %s85, 0
    %s88 = sadd.s32 %s87, 1
    %s89 = scalar_select %p86, %s87, %s88
    %p92 = pneg %p86
    %p93 = scmp.eq.s32.totalorder %s9, 1
    %p94 = por %p92, %p93
    %p95 = scmp.ne.s32.totalorder %s87, %s90
    %p96 = scmp.eq.s32.totalorder %s9, 0
    %p97 = por %p95, %p96
    %p98 = scmp.ne.s32.totalorder %s87, %s90
    %p99 = scmp.eq.s32.totalorder %s14, 1
    %p100 = por %p98, %p99
    %p101 = scmp.ne.s32.totalorder %s90, %s91
    %p102 = scmp.eq.s32.totalorder %s14, 0
    %p103 = por %p101, %p102
    %p104 = scmp.ne.s32.totalorder %s90, %s91
    %p105 = scmp.eq.s32.totalorder %s15, 1
    %p106 = por %p104, %p105
    %p108 = scmp.ne.s32.totalorder %s91, %s107
    %p109 = scmp.eq.s32.totalorder %s15, 0
    %p110 = por %p108, %p109
    %p111 = scmp.le.s32.totalorder 1, %s9
    %p112 = scmp.lt.s32.totalorder %s9, 3
    %p113 = pnand %p111, %p112
    %p114 = pneg %p113
    // Predicated region
    $region9: #{sharp_sep_conv.5} parent=5 // pred_check
      _
    $region10: #{sharp_sep_conv.5} parent=5 // pred_check_branch
      %116 = sbr.rel (%p113) target = $region12
    $region11: #{sharp_sep_conv.5} parent=5 // pred_region
      %s117 = ssub.s32 %s9, 1
      // Predicated region
      $region13: #{sharp_sep_conv.5} parent=11 // pred_check
        %p118 = pneg %p56
      $region14: #{sharp_sep_conv.5} parent=11 // pred_check_branch
        %120 = sbr.rel (%p118) target = $region16
      $region15: #{sharp_sep_conv.5} parent=11 // pred_region
        _
      $region16: #{sharp_sep_conv.5} parent=11 // pred_fallthru
        _
      // Predicated region
      $region17: #{sharp_sep_conv.5} parent=11 // pred_check
        %p121 = pneg %p77
      $region18: #{sharp_sep_conv.5} parent=11 // pred_check_branch
        %123 = sbr.rel (%p121) target = $region20
      $region19: #{sharp_sep_conv.5} parent=11 // pred_region
        _
      $region20: #{sharp_sep_conv.5} parent=11 // pred_fallthru
        _
    $region12: #{sharp_sep_conv.5} parent=5 // pred_fallthru
      _
    %p124 = scmp.lt.s32.totalorder %s9, 2
    // Predicated region
    $region21: #{sharp_sep_conv.5} parent=5 // pred_check
      %p125 = pneg %p124
    $region22: #{sharp_sep_conv.5} parent=5 // pred_check_branch
      %127 = sbr.rel (%p125) target = $region24
    $region23: #{sharp_sep_conv.5} parent=5 // pred_region
      // Predicated region
      $region25: #{sharp_sep_conv.5} parent=23 // pred_check
        %p128 = pneg %p29
      $region26: #{sharp_sep_conv.5} parent=23 // pred_check_branch
        %130 = sbr.rel (%p128) target = $region28
      $region27: #{sharp_sep_conv.5} parent=23 // pred_region
        %p131 = scmp.lt.s32.totalorder %s9, 1
        %s132 = scalar_select %p131, %s9, 1
        %s133 = smul.addr %s132, 2
        %s134 = smul.addr %s133, 4
        %s135 = scalar_lea.vmem %s0, %s134
      $region28: #{sharp_sep_conv.5} parent=23 // pred_fallthru
        _
    $region24: #{sharp_sep_conv.5} parent=5 // pred_fallthru
      _
    %p136 = scmp.le.s32.totalorder 1, %s9
    %p137 = scmp.lt.s32.totalorder %s9, 3
    %p138 = pnand %p136, %p137
    %p139 = pneg %p138
    // Predicated region
    $region29: #{sharp_sep_conv.5} parent=5 // pred_check
      _
    $region30: #{sharp_sep_conv.5} parent=5 // pred_check_branch
      %141 = sbr.rel (%p138) target = $region32
    $region31: #{sharp_sep_conv.5} parent=5 // pred_region
      %s142 = ssub.s32 %s9, 1
      %p143 = scmp.lt.s32.totalorder %s14, 1
      %s144 = scalar_select %p143, %s14, 1
      %s145 = smul.addr %s144, 2
      %s146 = smul.addr %s145, 4
      %s147 = scalar_lea.vmem %s0, %s146
      %p148 = pneg %p35
      %p149 = pneg %p32
      %p150 = pneg %p56
      %p151 = pneg %p53
      %p152 = pneg %p77
      %p153 = pneg %p74
      %p154 = pneg %p103
      %p155 = pneg %p100
      %p156 = scmp.lt.s32.totalorder %s14, 1
      %s157 = scalar_select %p156, %s14, 1
      %s158 = smul.addr %s157, 2
      %s159 = smul.addr %s158, 8
      %s160 = scalar_lea.vmem %s3, %s159
      %p161 = scmp.lt.s32.totalorder %s14, 1
      %s162 = scalar_select %p161, %s14, 1
      %s163 = smul.addr %s162, 2
      %s164 = smul.addr %s163, 4
      %s165 = scalar_lea.vmem %s0, %s164
      %p166 = scmp.lt.s32.totalorder %s14, 1
      %s167 = scalar_select %p166, %s14, 1
      %s168 = smul.addr %s167, 2
      %s169 = smul.addr %s168, 8
      %s170 = scalar_lea.vmem %s3, %s169
      %v171 = vld [vmem:[%s165] sm:$0xff]
      %v172 = vunpack.c.l.bf16 %v171
      %v173 = vunpack.c.h.bf16 %v171
      %v174 = vld [vmem:[%s1] sm:$0xff]
      %176 = vset.pattern.permute.xlu0 0
      %177 = vperm.xlu0 %176, %v174
      %v178 = vpop.permute.xlu0 %177
      %v180 = vmul.f32 %v172, %v178
      %v181 = vmul.f32 %v173, %v178
      %v182 = vld [vmem:[%s2] sm:$0xff]
      %184 = vset.pattern.permute.xlu0 0
      %185 = vperm.xlu0 %184, %v182
      %v186 = vpop.permute.xlu0 %185
      %v188 = vadd.f32 %v180, %v186
      %v189 = vadd.f32 %v181, %v186
      %190 = vst [vmem:[%s170] sm:$0xff] %v188
      %191 = vst [vmem:[%s170 + $0x8] sm:$0xff] %v189
      %p192 = scmp.lt.s32.totalorder %s14, 1
      %s193 = scalar_select %p192, %s14, 1
      %s194 = smul.addr %s193, 2
      %s195 = smul.addr %s194, 8
      %s196 = scalar_lea.vmem %s3, %s195
      // Predicated region
      $region33: #{sharp_sep_conv.5} parent=31 // pred_check
        %p197 = pneg %p100
      $region34: #{sharp_sep_conv.5} parent=31 // pred_check_branch
        %199 = sbr.rel (%p197) target = $region36
      $region35: #{sharp_sep_conv.5} parent=31 // pred_region
        _
      $region36: #{sharp_sep_conv.5} parent=31 // pred_fallthru
        _
    $region32: #{sharp_sep_conv.5} parent=5 // pred_fallthru
      _
    %p200 = scmp.le.s32.totalorder 2, %s9
    // Predicated region
    $region37: #{sharp_sep_conv.5} parent=5 // pred_check
      %p201 = pneg %p200
    $region38: #{sharp_sep_conv.5} parent=5 // pred_check_branch
      %203 = sbr.rel (%p201) target = $region40
    $region39: #{sharp_sep_conv.5} parent=5 // pred_region
      %s204 = ssub.s32 %s9, 2
      // Predicated region
      $region41: #{sharp_sep_conv.5} parent=39 // pred_check
        %p205 = pneg %p106
      $region42: #{sharp_sep_conv.5} parent=39 // pred_check_branch
        %207 = sbr.rel (%p205) target = $region44
      $region43: #{sharp_sep_conv.5} parent=39 // pred_region
        %p208 = scmp.lt.s32.totalorder %s15, 1
        %s209 = scalar_select %p208, %s15, 1
        %s210 = smul.addr %s209, 2
        %s211 = smul.addr %s210, 8
        %s212 = scalar_lea.vmem %s3, %s211
      $region44: #{sharp_sep_conv.5} parent=39 // pred_fallthru
        _
    $region40: #{sharp_sep_conv.5} parent=5 // pred_fallthru
      _
  $region6: #{sharp_sep_conv.5} parent=0 // loop_footer
    %s13 = sadd.s32 1, %s9
  $region7: #{sharp_sep_conv.5} parent=0 // loop_footer_branch
    %8 = sbr.rel target = $region3
  $region8: #{sharp_sep_conv.5} parent=0 // loop_exit
    _

// kernel: sharp_sep_conv.3
$region0: #{sharp_sep_conv.3}
  #allocation0 [shape = 'u32[]', space=smem, size = 0x4, offset = 0x4, fixed_abs, tag = 'smem constant byte address 0x4 - core index']
  #allocation1 [shape = 'u32[72,128]{1,0:T(1,128)}', space=vmem, size = 0x9000, scoped, tag = 'internal scratch']
  %s0 = inlined_call_operand.vmem [shape: f32[2,4,256], index: 0, kind: input, shape index: {}]
  %s1 = inlined_call_operand.vmem [shape: f32[4,1], index: 1, kind: input, shape index: {}]
  %s2 = inlined_call_operand.vmem [shape: f32[4,1], index: 2, kind: input, shape index: {}]
  %s3 = inlined_call_operand.vmem [shape: f32[9,4,1], index: 3, kind: input, shape index: {}]
  %s4 = inlined_call_operand.vmem [shape: bf16[8,4], index: 4, kind: input, shape index: {}]
  %s5 = inlined_call_operand.vmem [shape: bf16[2,8,256], index: 5, kind: output, shape index: {0}]
  %s6 = inlined_call_operand.vmem [shape: f32[2,8,2], index: 6, kind: output, shape index: {1}]
  %7 = xla_tuple %s5, %s6
  %s8 = sld [smem:[#allocation0]]
  $region61: #{sharp_sep_conv.3} parent=0
    _
  %s10 = ssub.s32 1, %s8
  %s11 = scalar_select 0, %s10, %s8
  loop: start=0, step=1, limit=4
  $region2: #{sharp_sep_conv.3} parent=0 // loop_pre_header
    _
  $region3: #{sharp_sep_conv.3} parent=0 // loop_header
    %s13 = sphi 0, %s17
    %p14 = scmp.ge.s32.totalorder %s13, 4
    %s23 = sphi 0, %s25
    %s26 = sphi 0, %s23
    %s27 = sphi 0, %s26
    %s43 = sphi 0, %s27
    %s47 = sphi 0, %s47
    %s49 = sphi 0, %s47
    %s50 = sphi 0, %s49
    %s64 = sphi 0, %s50
    %s68 = sphi 0, %s68
    %s70 = sphi 0, %s68
    %s71 = sphi 0, %s70
    %s85 = sphi 0, %s71
    %s89 = sphi 0, %s89
    %s91 = sphi 0, %s89
    %s92 = sphi 0, %s91
    %s106 = sphi 0, %s92
    %s110 = sphi 0, %s110
    %s112 = sphi 0, %s110
    %s113 = sphi 0, %s112
    %s127 = sphi 0, %s113
    %s133 = sphi 0, %s135
    %s136 = sphi 0, %s133
    %s137 = sphi 0, %s136
    %s153 = sphi 0, %s137
    %s159 = sphi 0, %s161
    %s162 = sphi 0, %s159
    %s163 = sphi 0, %s162
    %s179 = sphi 0, %s163
  $region4: #{sharp_sep_conv.3} parent=0 // loop_header_branch
    %16 = sbr.rel (%p14) target = $region8
  $region5: #{sharp_sep_conv.3} parent=0 // loop_body
    %s18 = ssub.s32 %s13, 1
    %s19 = ssub.s32 %s13, 2
    %s20 = sadd.s32 %s13, 1
    %s21 = ssub.s32 %s13, %s20
    %p22 = scmp.eq.s32.totalorder %s21, 0
    %s24 = sadd.s32 %s23, 1
    %s25 = scalar_select %p22, %s23, %s24
    %p28 = pneg %p22
    %p29 = scmp.eq.s32.totalorder %s13, 1
    %p30 = por %p28, %p29
    %p31 = scmp.ne.s32.totalorder %s23, %s26
    %p32 = scmp.eq.s32.totalorder %s13, 0
    %p33 = por %p31, %p32
    %p34 = scmp.ne.s32.totalorder %s23, %s26
    %p35 = scmp.eq.s32.totalorder %s18, 1
    %p36 = por %p34, %p35
    %p37 = scmp.ne.s32.totalorder %s26, %s27
    %p38 = scmp.eq.s32.totalorder %s18, 0
    %p39 = por %p37, %p38
    %p40 = scmp.ne.s32.totalorder %s26, %s27
    %p41 = scmp.eq.s32.totalorder %s19, 1
    %p42 = por %p40, %p41
    %p44 = scmp.ne.s32.totalorder %s27, %s43
    %p45 = scmp.eq.s32.totalorder %s19, 0
    %p46 = por %p44, %p45
    %s48 = sadd.s32 %s47, 1
    %p51 = scmp.eq.s32.totalorder %s13, 1
    %p52 = scmp.ne.s32.totalorder %s47, %s49
    %p53 = scmp.eq.s32.totalorder %s13, 0
    %p54 = por %p52, %p53
    %p55 = scmp.ne.s32.totalorder %s47, %s49
    %p56 = scmp.eq.s32.totalorder %s18, 1
    %p57 = por %p55, %p56
    %p58 = scmp.ne.s32.totalorder %s49, %s50
    %p59 = scmp.eq.s32.totalorder %s18, 0
    %p60 = por %p58, %p59
    %p61 = scmp.ne.s32.totalorder %s49, %s50
    %p62 = scmp.eq.s32.totalorder %s19, 1
    %p63 = por %p61, %p62
    %p65 = scmp.ne.s32.totalorder %s50, %s64
    %p66 = scmp.eq.s32.totalorder %s19, 0
    %p67 = por %p65, %p66
    %s69 = sadd.s32 %s68, 1
    %p72 = scmp.eq.s32.totalorder %s13, 1
    %p73 = scmp.ne.s32.totalorder %s68, %s70
    %p74 = scmp.eq.s32.totalorder %s13, 0
    %p75 = por %p73, %p74
    %p76 = scmp.ne.s32.totalorder %s68, %s70
    %p77 = scmp.eq.s32.totalorder %s18, 1
    %p78 = por %p76, %p77
    %p79 = scmp.ne.s32.totalorder %s70, %s71
    %p80 = scmp.eq.s32.totalorder %s18, 0
    %p81 = por %p79, %p80
    %p82 = scmp.ne.s32.totalorder %s70, %s71
    %p83 = scmp.eq.s32.totalorder %s19, 1
    %p84 = por %p82, %p83
    %p86 = scmp.ne.s32.totalorder %s71, %s85
    %p87 = scmp.eq.s32.totalorder %s19, 0
    %p88 = por %p86, %p87
    %s90 = sadd.s32 %s89, 1
    %p93 = scmp.eq.s32.totalorder %s13, 1
    %p94 = scmp.ne.s32.totalorder %s89, %s91
    %p95 = scmp.eq.s32.totalorder %s13, 0
    %p96 = por %p94, %p95
    %p97 = scmp.ne.s32.totalorder %s89, %s91
    %p98 = scmp.eq.s32.totalorder %s18, 1
    %p99 = por %p97, %p98
    %p100 = scmp.ne.s32.totalorder %s91, %s92
    %p101 = scmp.eq.s32.totalorder %s18, 0
    %p102 = por %p100, %p101
    %p103 = scmp.ne.s32.totalorder %s91, %s92
    %p104 = scmp.eq.s32.totalorder %s19, 1
    %p105 = por %p103, %p104
    %p107 = scmp.ne.s32.totalorder %s92, %s106
    %p108 = scmp.eq.s32.totalorder %s19, 0
    %p109 = por %p107, %p108
    %s111 = sadd.s32 %s110, 1
    %p114 = scmp.eq.s32.totalorder %s13, 1
    %p115 = scmp.ne.s32.totalorder %s110, %s112
    %p116 = scmp.eq.s32.totalorder %s13, 0
    %p117 = por %p115, %p116
    %p118 = scmp.ne.s32.totalorder %s110, %s112
    %p119 = scmp.eq.s32.totalorder %s18, 1
    %p120 = por %p118, %p119
    %p121 = scmp.ne.s32.totalorder %s112, %s113
    %p122 = scmp.eq.s32.totalorder %s18, 0
    %p123 = por %p121, %p122
    %p124 = scmp.ne.s32.totalorder %s112, %s113
    %p125 = scmp.eq.s32.totalorder %s19, 1
    %p126 = por %p124, %p125
    %p128 = scmp.ne.s32.totalorder %s113, %s127
    %p129 = scmp.eq.s32.totalorder %s19, 0
    %p130 = por %p128, %p129
    %s131 = ssub.s32 %s13, %s20
    %p132 = scmp.eq.s32.totalorder %s131, 0
    %s134 = sadd.s32 %s133, 1
    %s135 = scalar_select %p132, %s133, %s134
    %p138 = pneg %p132
    %p139 = scmp.eq.s32.totalorder %s13, 1
    %p140 = por %p138, %p139
    %p141 = scmp.ne.s32.totalorder %s133, %s136
    %p142 = scmp.eq.s32.totalorder %s13, 0
    %p143 = por %p141, %p142
    %p144 = scmp.ne.s32.totalorder %s133, %s136
    %p145 = scmp.eq.s32.totalorder %s18, 1
    %p146 = por %p144, %p145
    %p147 = scmp.ne.s32.totalorder %s136, %s137
    %p148 = scmp.eq.s32.totalorder %s18, 0
    %p149 = por %p147, %p148
    %p150 = scmp.ne.s32.totalorder %s136, %s137
    %p151 = scmp.eq.s32.totalorder %s19, 1
    %p152 = por %p150, %p151
    %p154 = scmp.ne.s32.totalorder %s137, %s153
    %p155 = scmp.eq.s32.totalorder %s19, 0
    %p156 = por %p154, %p155
    %s157 = ssub.s32 %s13, %s20
    %p158 = scmp.eq.s32.totalorder %s157, 0
    %s160 = sadd.s32 %s159, 1
    %s161 = scalar_select %p158, %s159, %s160
    %p164 = pneg %p158
    %p165 = scmp.eq.s32.totalorder %s13, 1
    %p166 = por %p164, %p165
    %p167 = scmp.ne.s32.totalorder %s159, %s162
    %p168 = scmp.eq.s32.totalorder %s13, 0
    %p169 = por %p167, %p168
    %p170 = scmp.ne.s32.totalorder %s159, %s162
    %p171 = scmp.eq.s32.totalorder %s18, 1
    %p172 = por %p170, %p171
    %p173 = scmp.ne.s32.totalorder %s162, %s163
    %p174 = scmp.eq.s32.totalorder %s18, 0
    %p175 = por %p173, %p174
    %p176 = scmp.ne.s32.totalorder %s162, %s163
    %p177 = scmp.eq.s32.totalorder %s19, 1
    %p178 = por %p176, %p177
    %p180 = scmp.ne.s32.totalorder %s163, %s179
    %p181 = scmp.eq.s32.totalorder %s19, 0
    %p182 = por %p180, %p181
    %p183 = scmp.le.s32.totalorder 1, %s13
    %p184 = scmp.lt.s32.totalorder %s13, 3
    %p185 = pnand %p183, %p184
    %p186 = pneg %p185
    // Predicated region
    $region9: #{sharp_sep_conv.3} parent=5 // pred_check
      _
    $region10: #{sharp_sep_conv.3} parent=5 // pred_check_branch
      %188 = sbr.rel (%p185) target = $region12
    $region11: #{sharp_sep_conv.3} parent=5 // pred_region
      %s189 = ssub.s32 %s13, 1
      // Predicated region
      $region13: #{sharp_sep_conv.3} parent=11 // pred_check
        %p190 = pneg %p60
      $region14: #{sharp_sep_conv.3} parent=11 // pred_check_branch
        %192 = sbr.rel (%p190) target = $region16
      $region15: #{sharp_sep_conv.3} parent=11 // pred_region
        _
      $region16: #{sharp_sep_conv.3} parent=11 // pred_fallthru
        _
      // Predicated region
      $region17: #{sharp_sep_conv.3} parent=11 // pred_check
        %p193 = pneg %p81
      $region18: #{sharp_sep_conv.3} parent=11 // pred_check_branch
        %195 = sbr.rel (%p193) target = $region20
      $region19: #{sharp_sep_conv.3} parent=11 // pred_region
        _
      $region20: #{sharp_sep_conv.3} parent=11 // pred_fallthru
        _
      // Predicated region
      $region21: #{sharp_sep_conv.3} parent=11 // pred_check
        %p196 = pneg %p102
      $region22: #{sharp_sep_conv.3} parent=11 // pred_check_branch
        %198 = sbr.rel (%p196) target = $region24
      $region23: #{sharp_sep_conv.3} parent=11 // pred_region
        _
      $region24: #{sharp_sep_conv.3} parent=11 // pred_fallthru
        _
      // Predicated region
      $region25: #{sharp_sep_conv.3} parent=11 // pred_check
        %p199 = pneg %p123
      $region26: #{sharp_sep_conv.3} parent=11 // pred_check_branch
        %201 = sbr.rel (%p199) target = $region28
      $region27: #{sharp_sep_conv.3} parent=11 // pred_region
        _
      $region28: #{sharp_sep_conv.3} parent=11 // pred_fallthru
        _
    $region12: #{sharp_sep_conv.3} parent=5 // pred_fallthru
      _
    %p202 = scmp.lt.s32.totalorder %s13, 2
    // Predicated region
    $region29: #{sharp_sep_conv.3} parent=5 // pred_check
      %p203 = pneg %p202
    $region30: #{sharp_sep_conv.3} parent=5 // pred_check_branch
      %205 = sbr.rel (%p203) target = $region32
    $region31: #{sharp_sep_conv.3} parent=5 // pred_region
      // Predicated region
      $region33: #{sharp_sep_conv.3} parent=31 // pred_check
        %p206 = pneg %p33
      $region34: #{sharp_sep_conv.3} parent=31 // pred_check_branch
        %208 = sbr.rel (%p206) target = $region36
      $region35: #{sharp_sep_conv.3} parent=31 // pred_region
        %p209 = scmp.lt.s32.totalorder %s13, 1
        %s210 = scalar_select %p209, %s13, 1
        %s211 = smul.addr %s210, 2
        %s212 = smul.addr %s211, 4
        %s213 = scalar_lea.vmem %s0, %s212
      $region36: #{sharp_sep_conv.3} parent=31 // pred_fallthru
        _
    $region32: #{sharp_sep_conv.3} parent=5 // pred_fallthru
      _
    %p214 = scmp.le.s32.totalorder 1, %s13
    %p215 = scmp.lt.s32.totalorder %s13, 3
    %p216 = pnand %p214, %p215
    %p217 = pneg %p216
    // Predicated region
    $region37: #{sharp_sep_conv.3} parent=5 // pred_check
      _
    $region38: #{sharp_sep_conv.3} parent=5 // pred_check_branch
      %219 = sbr.rel (%p216) target = $region40
    $region39: #{sharp_sep_conv.3} parent=5 // pred_region
      %s220 = ssub.s32 %s13, 1
      %p221 = scmp.lt.s32.totalorder %s18, 1
      %s222 = scalar_select %p221, %s18, 1
      %s223 = smul.addr %s222, 2
      %s224 = smul.addr %s223, 4
      %s225 = scalar_lea.vmem %s0, %s224
      %p226 = pneg %p39
      %p227 = pneg %p36
      %p228 = pneg %p60
      %p229 = pneg %p57
      %p230 = pneg %p81
      %p231 = pneg %p78
      %p232 = pneg %p102
      %p233 = pneg %p99
      %p234 = pneg %p123
      %p235 = pneg %p120
      %p236 = pneg %p149
      %p237 = pneg %p146
      %p238 = scmp.lt.s32.totalorder %s18, 1
      %s239 = scalar_select %p238, %s18, 1
      %s240 = smul.addr %s239, 2
      %s241 = smul.addr %s240, 4
      %s242 = scalar_lea.vmem %s5, %s241
      %p243 = pneg %p175
      %p244 = pneg %p172
      %p245 = scmp.lt.s32.totalorder %s18, 1
      %s246 = scalar_select %p245, %s18, 1
      %s247 = smul.addr %s246, 8
      %s248 = scalar_lea.vmem %s6, %s247
      %p249 = scmp.lt.s32.totalorder %s18, 1
      %s250 = scalar_select %p249, %s18, 1
      %s251 = smul.addr %s250, 2
      %s252 = smul.addr %s251, 4
      %s253 = scalar_lea.vmem %s0, %s252
      %p254 = scmp.lt.s32.totalorder %s18, 1
      %s255 = scalar_select %p254, %s18, 1
      %s256 = smul.addr %s255, 2
      %s257 = smul.addr %s256, 4
      %s258 = scalar_lea.vmem %s5, %s257
      %p259 = scmp.lt.s32.totalorder %s18, 1
      %s260 = scalar_select %p259, %s18, 1
      %s261 = smul.addr %s260, 8
      %s262 = scalar_lea.vmem %s6, %s261
      %v264 = vld [vmem:[%s253] sm:$0xff]
      %v265 = vld [vmem:[%s1] sm:$0xf]
      %267 = vset.pattern.permute.xlu0 0
      %268 = vperm.xlu0 %267, %v265
      %v269 = vpop.permute.xlu0 %268
      %v271 = vunpack.c.l.s4 839922192
      %v272 = vunpack.c.0.s8 %v271
      %v273 = vperm.slane %v269, %v272
      %v275 = vmul.f32 %v264, %v273
      %v276 = vld [vmem:[%s2] sm:$0xf]
      %278 = vset.pattern.permute.xlu0 0
      %279 = vperm.xlu0 %278, %v276
      %v280 = vpop.permute.xlu0 %279
      %v282 = vunpack.c.l.s4 839922192
      %v283 = vunpack.c.0.s8 %v282
      %v284 = vperm.slane %v280, %v283
      %v286 = vadd.f32 %v275, %v284
      %v287 = vmax.f32 %v286, 0.0
      %v288 = vlaneseq
      %v289 = vand.u32 %v288, 127
      %v290 = vadd.s32 %v289, 128
      %vm291 = vcmp.lt.s32.totalorder %v289, 0
      %v292 = vsub.s32 0, %v289
      %v293 = vsel %vm291, %v292, %v289
      %v294 = vshrl.u32 %v293, 4
      %v295 = vand.u32 %v293, 15
      %v296 = vsub.s32 0, %v295
      %v297 = vsel %vm291, %v296, %v295
      %vm298 = vcmp.lt.s32.totalorder %v290, 0
      %v299 = vsub.s32 0, %v290
      %v300 = vsel %vm298, %v299, %v290
      %v301 = vshrl.u32 %v300, 4
      %v302 = vand.u32 %v300, 15
      %v303 = vsub.s32 0, %v302
      %v304 = vsel %vm298, %v303, %v302
      %vm305 = vcmp.ne.s32.totalorder %v297, 0
      %vm306 = vcmp.ne.s32.totalorder %v304, 0
      %vm307 = vcmp.lt.s32.totalorder %v297, 0
      %vm308 = vcmp.lt.s32.totalorder %v304, 0
      %vm309 = vmand %vm307, %vm305
      %vm310 = vmand %vm308, %vm306
      %v311 = vadd.s32 %v297, 16
      %v312 = vadd.s32 %v304, 16
      %v313 = vsel %vm309, %v311, %v297
      %v314 = vsel %vm310, %v312, %v304
      %vm315 = vcmp.ge.s32.totalorder %v289, 16
      %vm316 = vcmp.ge.s32.totalorder %v290, 16
      %vm317 = vcmp.lt.s32.totalorder %v289, 256
      %vm318 = vcmp.lt.s32.totalorder %v290, 256
      %vm319 = vmand %vm315, %vm317
      %vm320 = vmand %vm316, %vm318
      %v321 = vsel %vm319, 1, 0
      %v322 = vsel %vm320, 1, 0
      %v323 = vcvt.s32.f32 %v321
      %v324 = vcvt.s32.f32 %v322
      %vm325 = vcmp.ge.s32.totalorder %v313, 1
      %vm326 = vcmp.ge.s32.totalorder %v314, 1
      %vm327 = vcmp.lt.s32.totalorder %v313, 16
      %vm328 = vcmp.lt.s32.totalorder %v314, 16
      %vm329 = vmand %vm325, %vm327
      %vm330 = vmand %vm326, %vm328
      %v331 = vsel %vm329, 1, 0
      %v332 = vsel %vm330, 1, 0
      %v333 = vcvt.s32.f32 %v331
      %v334 = vcvt.s32.f32 %v332
      %vm335 = vcmp.ge.s32.totalorder %v289, 0
      %vm336 = vcmp.ge.s32.totalorder %v290, 0
      %vm337 = vcmp.lt.s32.totalorder %v289, 240
      %vm338 = vcmp.lt.s32.totalorder %v290, 240
      %vm339 = vmand %vm335, %vm337
      %vm340 = vmand %vm336, %vm338
      %v341 = vsel %vm339, 1, 0
      %v342 = vsel %vm340, 1, 0
      %v343 = vcvt.s32.f32 %v341
      %v344 = vcvt.s32.f32 %v342
      %vm345 = vcmp.ge.s32.totalorder %v313, 0
      %vm346 = vcmp.ge.s32.totalorder %v314, 0
      %vm347 = vcmp.lt.s32.totalorder %v313, 15
      %vm348 = vcmp.lt.s32.totalorder %v314, 15
      %vm349 = vmand %vm345, %vm347
      %vm350 = vmand %vm346, %vm348
      %v351 = vsel %vm349, 1, 0
      %v352 = vsel %vm350, 1, 0
      %v353 = vcvt.s32.f32 %v351
      %v354 = vcvt.s32.f32 %v352
      %356 = vst [vmem:[#allocation1] ss:$2 sm:$0xff] %v287
      %v357 = vld.sshfl [vmem:[#allocation1] sm:$0xff pattern:$0x75316420]
      %v358 = vld.sshfl [vmem:[#allocation1 + $0x8] sm:$0xff pattern:$0x75316420]
      %361 = vrot.lane.b32.xlu0 %v357, 17
      %v362 = vpop.permute.xlu0 %361
      %363 = vrot.lane.b32.xlu0 %v358, 17
      %v364 = vpop.permute.xlu0 %363
      %vm365 = vcmp.lt.s32.totalorder %v289, 17
      %v366 = vsel %vm365, %v362, %v364
      %v367 = vsel %vm365, %v364, %v362
      %v368 = vmul.f32 %v323, %v333
      %v369 = vmul.f32 %v324, %v334
      %v370 = vmul.f32 %v367, %v368
      %v371 = vmul.f32 %v366, %v369
      %v372 = vld [vmem:[%s3] sm:$0xf]
      %374 = vset.pattern.permute.xlu0 0
      %375 = vperm.xlu0 %374, %v372
      %v376 = vpop.permute.xlu0 %375
      %v378 = vmul.f32 %v376, %v370
      %v379 = vmul.f32 %v376, %v371
      %v380 = vadd.f32 %v378, 0.0
      %v381 = vadd.f32 %v379, 0.0
      %382 = vst [vmem:[#allocation1] ss:$2 sm:$0xff] %v287
      %v383 = vld.sshfl [vmem:[#allocation1] sm:$0xff pattern:$0x75316420]
      %v384 = vld.sshfl [vmem:[#allocation1 + $0x8] sm:$0xff pattern:$0x75316420]
      %387 = vrot.lane.b32.xlu0 %v383, 16
      %v388 = vpop.permute.xlu0 %387
      %389 = vrot.lane.b32.xlu0 %v384, 16
      %v390 = vpop.permute.xlu0 %389
      %vm391 = vcmp.lt.s32.totalorder %v289, 16
      %v392 = vsel %vm391, %v388, %v390
      %v393 = vsel %vm391, %v390, %v388
      %v394 = vmul.f32 %v393, %v323
      %v395 = vmul.f32 %v392, %v324
      %s396 = scalar_lea.vmem %s3, 4
      %v397 = vld [vmem:[%s396] sm:$0xf]
      %399 = vset.pattern.permute.xlu0 0
      %400 = vperm.xlu0 %399, %v397
      %v401 = vpop.permute.xlu0 %400
      %v403 = vmul.f32 %v401, %v394
      %v404 = vmul.f32 %v401, %v395
      %v405 = vadd.f32 %v380, %v403
      %v406 = vadd.f32 %v381, %v404
      %407 = vst [vmem:[#allocation1] ss:$2 sm:$0xff] %v287
      %v408 = vld.sshfl [vmem:[#allocation1] sm:$0xff pattern:$0x75316420]
      %v409 = vld.sshfl [vmem:[#allocation1 + $0x8] sm:$0xff pattern:$0x75316420]
      %412 = vrot.lane.b32.xlu0 %v408, 15
      %v413 = vpop.permute.xlu0 %412
      %414 = vrot.lane.b32.xlu0 %v409, 15
      %v415 = vpop.permute.xlu0 %414
      %vm416 = vcmp.lt.s32.totalorder %v289, 15
      %v417 = vsel %vm416, %v413, %v415
      %v418 = vsel %vm416, %v415, %v413
      %v419 = vmul.f32 %v323, %v353
      %v420 = vmul.f32 %v324, %v354
      %v421 = vmul.f32 %v418, %v419
      %v422 = vmul.f32 %v417, %v420
      %s423 = scalar_lea.vmem %s3, 8
      %v424 = vld [vmem:[%s423] sm:$0xf]
      %426 = vset.pattern.permute.xlu0 0
      %427 = vperm.xlu0 %426, %v424
      %v428 = vpop.permute.xlu0 %427
      %v430 = vmul.f32 %v428, %v421
      %v431 = vmul.f32 %v428, %v422
      %v432 = vadd.f32 %v405, %v430
      %v433 = vadd.f32 %v406, %v431
      %434 = vst [vmem:[#allocation1] ss:$2 sm:$0xff] %v287
      %v435 = vld.sshfl [vmem:[#allocation1] sm:$0xff pattern:$0x75316420]
      %v436 = vld.sshfl [vmem:[#allocation1 + $0x8] sm:$0xff pattern:$0x75316420]
      %439 = vrot.lane.b32.xlu0 %v435, 1
      %v440 = vpop.permute.xlu0 %439
      %441 = vrot.lane.b32.xlu0 %v436, 1
      %v442 = vpop.permute.xlu0 %441
      %vm443 = vcmp.lt.s32.totalorder %v289, 1
      %v444 = vsel %vm443, %v440, %v442
      %v445 = vsel %vm443, %v442, %v440
      %v446 = vmul.f32 %v445, %v333
      %v447 = vmul.f32 %v444, %v334
      %s448 = scalar_lea.vmem %s3, 12
      %v449 = vld [vmem:[%s448] sm:$0xf]
      %451 = vset.pattern.permute.xlu0 0
      %452 = vperm.xlu0 %451, %v449
      %v453 = vpop.permute.xlu0 %452
      %v455 = vmul.f32 %v453, %v446
      %v456 = vmul.f32 %v453, %v447
      %v457 = vadd.f32 %v432, %v455
      %v458 = vadd.f32 %v433, %v456
      %s459 = scalar_lea.vmem %s3, 16
      %v460 = vld [vmem:[%s459] sm:$0xf]
      %462 = vset.pattern.permute.xlu0 0
      %463 = vperm.xlu0 %462, %v460
      %v464 = vpop.permute.xlu0 %463
      %466 = vst [vmem:[#allocation1] ss:$2 sm:$0xff] %v287
      %v467 = vld.sshfl [vmem:[#allocation1] sm:$0xff pattern:$0x75316420]
      %v468 = vld.sshfl [vmem:[#allocation1 + $0x8] sm:$0xff pattern:$0x75316420]
      %v471 = vmul.f32 %v464, %v467
      %v472 = vmul.f32 %v464, %v468
      %v473 = vadd.f32 %v457, %v471
      %v474 = vadd.f32 %v458, %v472
      %475 = vst [vmem:[#allocation1] ss:$2 sm:$0xff] %v287
      %v476 = vld.sshfl [vmem:[#allocation1] sm:$0xff pattern:$0x75316420]
      %v477 = vld.sshfl [vmem:[#allocation1 + $0x8] sm:$0xff pattern:$0x75316420]
      %480 = vrot.lane.b32.xlu0 %v476, 127
      %v481 = vpop.permute.xlu0 %480
      %482 = vrot.lane.b32.xlu0 %v477, 127
      %v483 = vpop.permute.xlu0 %482
      %vm484 = vcmp.lt.s32.totalorder %v289, 127
      %v485 = vsel %vm484, %v481, %v483
      %v486 = vsel %vm484, %v483, %v481
      %v487 = vmul.f32 %v485, %v353
      %v488 = vmul.f32 %v486, %v354
      %s489 = scalar_lea.vmem %s3, 20
      %v490 = vld [vmem:[%s489] sm:$0xf]
      %492 = vset.pattern.permute.xlu0 0
      %493 = vperm.xlu0 %492, %v490
      %v494 = vpop.permute.xlu0 %493
      %v496 = vmul.f32 %v494, %v487
      %v497 = vmul.f32 %v494, %v488
      %v498 = vadd.f32 %v473, %v496
      %v499 = vadd.f32 %v474, %v497
      %500 = vst [vmem:[#allocation1] ss:$2 sm:$0xff] %v287
      %v501 = vld.sshfl [vmem:[#allocation1] sm:$0xff pattern:$0x75316420]
      %v502 = vld.sshfl [vmem:[#allocation1 + $0x8] sm:$0xff pattern:$0x75316420]
      %505 = vrot.lane.b32.xlu0 %v501, 113
      %v506 = vpop.permute.xlu0 %505
      %507 = vrot.lane.b32.xlu0 %v502, 113
      %v508 = vpop.permute.xlu0 %507
      %vm509 = vcmp.lt.s32.totalorder %v289, 113
      %v510 = vsel %vm509, %v506, %v508
      %v511 = vsel %vm509, %v508, %v506
      %v512 = vmul.f32 %v343, %v333
      %v513 = vmul.f32 %v344, %v334
      %v514 = vmul.f32 %v510, %v512
      %v515 = vmul.f32 %v511, %v513
      %s516 = scalar_lea.vmem %s3, 24
      %v517 = vld [vmem:[%s516] sm:$0xf]
      %519 = vset.pattern.permute.xlu0 0
      %520 = vperm.xlu0 %519, %v517
      %v521 = vpop.permute.xlu0 %520
      %v523 = vmul.f32 %v521, %v514
      %v524 = vmul.f32 %v521, %v515
      %v525 = vadd.f32 %v498, %v523
      %v526 = vadd.f32 %v499, %v524
      %527 = vst [vmem:[#allocation1] ss:$2 sm:$0xff] %v287
      %v528 = vld.sshfl [vmem:[#allocation1] sm:$0xff pattern:$0x75316420]
      %v529 = vld.sshfl [vmem:[#allocation1 + $0x8] sm:$0xff pattern:$0x75316420]
      %532 = vrot.lane.b32.xlu0 %v528, 112
      %v533 = vpop.permute.xlu0 %532
      %534 = vrot.lane.b32.xlu0 %v529, 112
      %v535 = vpop.permute.xlu0 %534
      %vm536 = vcmp.lt.s32.totalorder %v289, 112
      %v537 = vsel %vm536, %v533, %v535
      %v538 = vsel %vm536, %v535, %v533
      %v539 = vmul.f32 %v537, %v343
      %v540 = vmul.f32 %v538, %v344
      %s541 = scalar_lea.vmem %s3, 28
      %v542 = vld [vmem:[%s541] sm:$0xf]
      %544 = vset.pattern.permute.xlu0 0
      %545 = vperm.xlu0 %544, %v542
      %v546 = vpop.permute.xlu0 %545
      %v548 = vmul.f32 %v546, %v539
      %v549 = vmul.f32 %v546, %v540
      %v550 = vadd.f32 %v525, %v548
      %v551 = vadd.f32 %v526, %v549
      %552 = vst [vmem:[#allocation1] ss:$2 sm:$0xff] %v287
      %v553 = vld.sshfl [vmem:[#allocation1] sm:$0xff pattern:$0x75316420]
      %v554 = vld.sshfl [vmem:[#allocation1 + $0x8] sm:$0xff pattern:$0x75316420]
      %557 = vrot.lane.b32.xlu0 %v553, 111
      %v558 = vpop.permute.xlu0 %557
      %559 = vrot.lane.b32.xlu0 %v554, 111
      %v560 = vpop.permute.xlu0 %559
      %vm561 = vcmp.lt.s32.totalorder %v289, 111
      %v562 = vsel %vm561, %v558, %v560
      %v563 = vsel %vm561, %v560, %v558
      %v564 = vmul.f32 %v343, %v353
      %v565 = vmul.f32 %v344, %v354
      %v566 = vmul.f32 %v562, %v564
      %v567 = vmul.f32 %v563, %v565
      %s568 = scalar_lea.vmem %s3, 32
      %v569 = vld [vmem:[%s568] sm:$0xf]
      %571 = vset.pattern.permute.xlu0 0
      %572 = vperm.xlu0 %571, %v569
      %v573 = vpop.permute.xlu0 %572
      %v575 = vmul.f32 %v573, %v566
      %v576 = vmul.f32 %v573, %v567
      %v577 = vadd.f32 %v550, %v575
      %v578 = vadd.f32 %v551, %v576
      %v579 = vld [vmem:[%s4] sm:$0xf]
      %v580 = vpack.c.bf16 %v577, %v577
      %v581 = vpack.c.bf16 %v578, %v578
      %vm582 = vcmask 31744
      %v584 = vsel %vm582, %v579, 0
      %vm586 = vcmask 1041408
      %v588 = vsel %vm586, %v580, 0
      %v591 = vsel %vm586, %v581, 0
      %593 = vmatpush.bf16.msra.mxu0 0
      %594 = vmatpush.bf16.msra.mxu0 0
      %595 = vmatpush.bf16.msra.mxu0 0
      %596 = vmatpush.bf16.msra.mxu0 0
      %597 = vmatpush.bf16.msra.mxu0 0
      %598 = vmatpush.bf16.msra.mxu0 0
      %599 = vmatpush.bf16.msra.mxu0 0
      %600 = vmatpush.bf16.msra.mxu0 %v588
      %601 = vmatmul.bf16.gmra.mxu0 %v584
      %v602 = vpop.f32.mrf.mxu0
      %v603 = vadd.f32 0.0, %v602
      %v604 = vpop.f32.mrf.mxu0
      %605 = vdwg.mxu0
      %606 = vmatpush.bf16.msra.mxu0 0
      %607 = vmatpush.bf16.msra.mxu0 0
      %608 = vmatpush.bf16.msra.mxu0 0
      %609 = vmatpush.bf16.msra.mxu0 0
      %610 = vmatpush.bf16.msra.mxu0 0
      %611 = vmatpush.bf16.msra.mxu0 0
      %612 = vmatpush.bf16.msra.mxu0 0
      %613 = vmatpush.bf16.msra.mxu0 %v591
      %614 = vmatmul.bf16.gmra.mxu0 %v584
      %v615 = vpop.f32.mrf.mxu0
      %v616 = vadd.f32 0.0, %v615
      %v617 = vpop.f32.mrf.mxu0
      %618 = vdwg.mxu0
      %v619 = vadd.f32 %v603, %v616
      %620 = vadd.xlane.f32.xlu0 %v619
      %v621 = vpop.xlane.xlu0 %620
      %v622 = vmul.f32 %v603, %v603
      %v623 = vmul.f32 %v616, %v616
      %v624 = vadd.f32 %v622, %v623
      %625 = vadd.xlane.f32.xlu0 %v624
      %v626 = vpop.xlane.xlu0 %625
      %vm627 = vcmask 7168
      %v628 = vsel %vm627, %v621, %v626
      %vm629 = vcmask 15360
      %630 = vst.msk [vmem:[%s262] sm:$0xff] %vm629, %v628
      %v631 = vpack.c.bf16 %v616, %v603
      %632 = vst [vmem:[%s258] sm:$0xff] %v631
      %p633 = scmp.lt.s32.totalorder %s18, 1
      %s634 = scalar_select %p633, %s18, 1
      %s635 = smul.addr %s634, 2
      %s636 = smul.addr %s635, 4
      %s637 = scalar_lea.vmem %s5, %s636
      %p638 = scmp.lt.s32.totalorder %s18, 1
      %s639 = scalar_select %p638, %s18, 1
      %s640 = smul.addr %s639, 8
      %s641 = scalar_lea.vmem %s6, %s640
      // Predicated region
      $region41: #{sharp_sep_conv.3} parent=39 // pred_check
        %p642 = pneg %p146
      $region42: #{sharp_sep_conv.3} parent=39 // pred_check_branch
        %644 = sbr.rel (%p642) target = $region44
      $region43: #{sharp_sep_conv.3} parent=39 // pred_region
        _
      $region44: #{sharp_sep_conv.3} parent=39 // pred_fallthru
        _
      // Predicated region
      $region45: #{sharp_sep_conv.3} parent=39 // pred_check
        %p645 = pneg %p172
      $region46: #{sharp_sep_conv.3} parent=39 // pred_check_branch
        %647 = sbr.rel (%p645) target = $region48
      $region47: #{sharp_sep_conv.3} parent=39 // pred_region
        _
      $region48: #{sharp_sep_conv.3} parent=39 // pred_fallthru
        _
    $region40: #{sharp_sep_conv.3} parent=5 // pred_fallthru
      _
    %p648 = scmp.le.s32.totalorder 2, %s13
    // Predicated region
    $region49: #{sharp_sep_conv.3} parent=5 // pred_check
      %p649 = pneg %p648
    $region50: #{sharp_sep_conv.3} parent=5 // pred_check_branch
      %651 = sbr.rel (%p649) target = $region52
    $region51: #{sharp_sep_conv.3} parent=5 // pred_region
      %s652 = ssub.s32 %s13, 2
      // Predicated region
      $region53: #{sharp_sep_conv.3} parent=51 // pred_check
        %p653 = pneg %p152
      $region54: #{sharp_sep_conv.3} parent=51 // pred_check_branch
        %655 = sbr.rel (%p653) target = $region56
      $region55: #{sharp_sep_conv.3} parent=51 // pred_region
        %p656 = scmp.lt.s32.totalorder %s19, 1
        %s657 = scalar_select %p656, %s19, 1
        %s658 = smul.addr %s657, 2
        %s659 = smul.addr %s658, 4
        %s660 = scalar_lea.vmem %s5, %s659
      $region56: #{sharp_sep_conv.3} parent=51 // pred_fallthru
        _
      // Predicated region
      $region57: #{sharp_sep_conv.3} parent=51 // pred_check
        %p661 = pneg %p178
      $region58: #{sharp_sep_conv.3} parent=51 // pred_check_branch
        %663 = sbr.rel (%p661) target = $region60
      $region59: #{sharp_sep_conv.3} parent=51 // pred_region
        %p664 = scmp.lt.s32.totalorder %s19, 1
        %s665 = scalar_select %p664, %s19, 1
        %s666 = smul.addr %s665, 8
        %s667 = scalar_lea.vmem %s6, %s666
      $region60: #{sharp_sep_conv.3} parent=51 // pred_fallthru
        _
    $region52: #{sharp_sep_conv.3} parent=5 // pred_fallthru
      _
  $region6: #{sharp_sep_conv.3} parent=0 // loop_footer
    %s17 = sadd.s32 1, %s13
  $region7: #{sharp_sep_conv.3} parent=0 // loop_footer_branch
    %12 = sbr.rel target = $region3
  $region8: #{sharp_sep_conv.3} parent=0 // loop_exit
    _

// kernel: sharp_sep_conv.4
$region0: #{sharp_sep_conv.4}
  #allocation0 [shape = 'u32[]', space=smem, size = 0x4, offset = 0x4, fixed_abs, tag = 'smem constant byte address 0x4 - core index']
  #allocation1 [shape = 'u32[72,128]{1,0:T(1,128)}', space=vmem, size = 0x9000, scoped, tag = 'internal scratch']
  %s0 = inlined_call_operand.vmem [shape: bf16[2,8,256], index: 0, kind: input, shape index: {}]
  %s1 = inlined_call_operand.vmem [shape: f32[8,1], index: 1, kind: input, shape index: {}]
  %s2 = inlined_call_operand.vmem [shape: f32[8,1], index: 2, kind: input, shape index: {}]
  %s3 = inlined_call_operand.vmem [shape: f32[9,8,1], index: 3, kind: input, shape index: {}]
  %s4 = inlined_call_operand.vmem [shape: bf16[8,8], index: 4, kind: input, shape index: {}]
  %s5 = inlined_call_operand.vmem [shape: bf16[2,8,256], index: 5, kind: output, shape index: {0}]
  %s6 = inlined_call_operand.vmem [shape: f32[2,8,2], index: 6, kind: output, shape index: {1}]
  %7 = xla_tuple %s5, %s6
  %s8 = sld [smem:[#allocation0]]
  $region61: #{sharp_sep_conv.4} parent=0
    _
  %s10 = ssub.s32 1, %s8
  %s11 = scalar_select 0, %s10, %s8
  loop: start=0, step=1, limit=4
  $region2: #{sharp_sep_conv.4} parent=0 // loop_pre_header
    _
  $region3: #{sharp_sep_conv.4} parent=0 // loop_header
    %s13 = sphi 0, %s17
    %p14 = scmp.ge.s32.totalorder %s13, 4
    %s23 = sphi 0, %s25
    %s26 = sphi 0, %s23
    %s27 = sphi 0, %s26
    %s43 = sphi 0, %s27
    %s47 = sphi 0, %s47
    %s49 = sphi 0, %s47
    %s50 = sphi 0, %s49
    %s64 = sphi 0, %s50
    %s68 = sphi 0, %s68
    %s70 = sphi 0, %s68
    %s71 = sphi 0, %s70
    %s85 = sphi 0, %s71
    %s89 = sphi 0, %s89
    %s91 = sphi 0, %s89
    %s92 = sphi 0, %s91
    %s106 = sphi 0, %s92
    %s110 = sphi 0, %s110
    %s112 = sphi 0, %s110
    %s113 = sphi 0, %s112
    %s127 = sphi 0, %s113
    %s133 = sphi 0, %s135
    %s136 = sphi 0, %s133
    %s137 = sphi 0, %s136
    %s153 = sphi 0, %s137
    %s159 = sphi 0, %s161
    %s162 = sphi 0, %s159
    %s163 = sphi 0, %s162
    %s179 = sphi 0, %s163
  $region4: #{sharp_sep_conv.4} parent=0 // loop_header_branch
    %16 = sbr.rel (%p14) target = $region8
  $region5: #{sharp_sep_conv.4} parent=0 // loop_body
    %s18 = ssub.s32 %s13, 1
    %s19 = ssub.s32 %s13, 2
    %s20 = sadd.s32 %s13, 1
    %s21 = ssub.s32 %s13, %s20
    %p22 = scmp.eq.s32.totalorder %s21, 0
    %s24 = sadd.s32 %s23, 1
    %s25 = scalar_select %p22, %s23, %s24
    %p28 = pneg %p22
    %p29 = scmp.eq.s32.totalorder %s13, 1
    %p30 = por %p28, %p29
    %p31 = scmp.ne.s32.totalorder %s23, %s26
    %p32 = scmp.eq.s32.totalorder %s13, 0
    %p33 = por %p31, %p32
    %p34 = scmp.ne.s32.totalorder %s23, %s26
    %p35 = scmp.eq.s32.totalorder %s18, 1
    %p36 = por %p34, %p35
    %p37 = scmp.ne.s32.totalorder %s26, %s27
    %p38 = scmp.eq.s32.totalorder %s18, 0
    %p39 = por %p37, %p38
    %p40 = scmp.ne.s32.totalorder %s26, %s27
    %p41 = scmp.eq.s32.totalorder %s19, 1
    %p42 = por %p40, %p41
    %p44 = scmp.ne.s32.totalorder %s27, %s43
    %p45 = scmp.eq.s32.totalorder %s19, 0
    %p46 = por %p44, %p45
    %s48 = sadd.s32 %s47, 1
    %p51 = scmp.eq.s32.totalorder %s13, 1
    %p52 = scmp.ne.s32.totalorder %s47, %s49
    %p53 = scmp.eq.s32.totalorder %s13, 0
    %p54 = por %p52, %p53
    %p55 = scmp.ne.s32.totalorder %s47, %s49
    %p56 = scmp.eq.s32.totalorder %s18, 1
    %p57 = por %p55, %p56
    %p58 = scmp.ne.s32.totalorder %s49, %s50
    %p59 = scmp.eq.s32.totalorder %s18, 0
    %p60 = por %p58, %p59
    %p61 = scmp.ne.s32.totalorder %s49, %s50
    %p62 = scmp.eq.s32.totalorder %s19, 1
    %p63 = por %p61, %p62
    %p65 = scmp.ne.s32.totalorder %s50, %s64
    %p66 = scmp.eq.s32.totalorder %s19, 0
    %p67 = por %p65, %p66
    %s69 = sadd.s32 %s68, 1
    %p72 = scmp.eq.s32.totalorder %s13, 1
    %p73 = scmp.ne.s32.totalorder %s68, %s70
    %p74 = scmp.eq.s32.totalorder %s13, 0
    %p75 = por %p73, %p74
    %p76 = scmp.ne.s32.totalorder %s68, %s70
    %p77 = scmp.eq.s32.totalorder %s18, 1
    %p78 = por %p76, %p77
    %p79 = scmp.ne.s32.totalorder %s70, %s71
    %p80 = scmp.eq.s32.totalorder %s18, 0
    %p81 = por %p79, %p80
    %p82 = scmp.ne.s32.totalorder %s70, %s71
    %p83 = scmp.eq.s32.totalorder %s19, 1
    %p84 = por %p82, %p83
    %p86 = scmp.ne.s32.totalorder %s71, %s85
    %p87 = scmp.eq.s32.totalorder %s19, 0
    %p88 = por %p86, %p87
    %s90 = sadd.s32 %s89, 1
    %p93 = scmp.eq.s32.totalorder %s13, 1
    %p94 = scmp.ne.s32.totalorder %s89, %s91
    %p95 = scmp.eq.s32.totalorder %s13, 0
    %p96 = por %p94, %p95
    %p97 = scmp.ne.s32.totalorder %s89, %s91
    %p98 = scmp.eq.s32.totalorder %s18, 1
    %p99 = por %p97, %p98
    %p100 = scmp.ne.s32.totalorder %s91, %s92
    %p101 = scmp.eq.s32.totalorder %s18, 0
    %p102 = por %p100, %p101
    %p103 = scmp.ne.s32.totalorder %s91, %s92
    %p104 = scmp.eq.s32.totalorder %s19, 1
    %p105 = por %p103, %p104
    %p107 = scmp.ne.s32.totalorder %s92, %s106
    %p108 = scmp.eq.s32.totalorder %s19, 0
    %p109 = por %p107, %p108
    %s111 = sadd.s32 %s110, 1
    %p114 = scmp.eq.s32.totalorder %s13, 1
    %p115 = scmp.ne.s32.totalorder %s110, %s112
    %p116 = scmp.eq.s32.totalorder %s13, 0
    %p117 = por %p115, %p116
    %p118 = scmp.ne.s32.totalorder %s110, %s112
    %p119 = scmp.eq.s32.totalorder %s18, 1
    %p120 = por %p118, %p119
    %p121 = scmp.ne.s32.totalorder %s112, %s113
    %p122 = scmp.eq.s32.totalorder %s18, 0
    %p123 = por %p121, %p122
    %p124 = scmp.ne.s32.totalorder %s112, %s113
    %p125 = scmp.eq.s32.totalorder %s19, 1
    %p126 = por %p124, %p125
    %p128 = scmp.ne.s32.totalorder %s113, %s127
    %p129 = scmp.eq.s32.totalorder %s19, 0
    %p130 = por %p128, %p129
    %s131 = ssub.s32 %s13, %s20
    %p132 = scmp.eq.s32.totalorder %s131, 0
    %s134 = sadd.s32 %s133, 1
    %s135 = scalar_select %p132, %s133, %s134
    %p138 = pneg %p132
    %p139 = scmp.eq.s32.totalorder %s13, 1
    %p140 = por %p138, %p139
    %p141 = scmp.ne.s32.totalorder %s133, %s136
    %p142 = scmp.eq.s32.totalorder %s13, 0
    %p143 = por %p141, %p142
    %p144 = scmp.ne.s32.totalorder %s133, %s136
    %p145 = scmp.eq.s32.totalorder %s18, 1
    %p146 = por %p144, %p145
    %p147 = scmp.ne.s32.totalorder %s136, %s137
    %p148 = scmp.eq.s32.totalorder %s18, 0
    %p149 = por %p147, %p148
    %p150 = scmp.ne.s32.totalorder %s136, %s137
    %p151 = scmp.eq.s32.totalorder %s19, 1
    %p152 = por %p150, %p151
    %p154 = scmp.ne.s32.totalorder %s137, %s153
    %p155 = scmp.eq.s32.totalorder %s19, 0
    %p156 = por %p154, %p155
    %s157 = ssub.s32 %s13, %s20
    %p158 = scmp.eq.s32.totalorder %s157, 0
    %s160 = sadd.s32 %s159, 1
    %s161 = scalar_select %p158, %s159, %s160
    %p164 = pneg %p158
    %p165 = scmp.eq.s32.totalorder %s13, 1
    %p166 = por %p164, %p165
    %p167 = scmp.ne.s32.totalorder %s159, %s162
    %p168 = scmp.eq.s32.totalorder %s13, 0
    %p169 = por %p167, %p168
    %p170 = scmp.ne.s32.totalorder %s159, %s162
    %p171 = scmp.eq.s32.totalorder %s18, 1
    %p172 = por %p170, %p171
    %p173 = scmp.ne.s32.totalorder %s162, %s163
    %p174 = scmp.eq.s32.totalorder %s18, 0
    %p175 = por %p173, %p174
    %p176 = scmp.ne.s32.totalorder %s162, %s163
    %p177 = scmp.eq.s32.totalorder %s19, 1
    %p178 = por %p176, %p177
    %p180 = scmp.ne.s32.totalorder %s163, %s179
    %p181 = scmp.eq.s32.totalorder %s19, 0
    %p182 = por %p180, %p181
    %p183 = scmp.le.s32.totalorder 1, %s13
    %p184 = scmp.lt.s32.totalorder %s13, 3
    %p185 = pnand %p183, %p184
    %p186 = pneg %p185
    // Predicated region
    $region9: #{sharp_sep_conv.4} parent=5 // pred_check
      _
    $region10: #{sharp_sep_conv.4} parent=5 // pred_check_branch
      %188 = sbr.rel (%p185) target = $region12
    $region11: #{sharp_sep_conv.4} parent=5 // pred_region
      %s189 = ssub.s32 %s13, 1
      // Predicated region
      $region13: #{sharp_sep_conv.4} parent=11 // pred_check
        %p190 = pneg %p60
      $region14: #{sharp_sep_conv.4} parent=11 // pred_check_branch
        %192 = sbr.rel (%p190) target = $region16
      $region15: #{sharp_sep_conv.4} parent=11 // pred_region
        _
      $region16: #{sharp_sep_conv.4} parent=11 // pred_fallthru
        _
      // Predicated region
      $region17: #{sharp_sep_conv.4} parent=11 // pred_check
        %p193 = pneg %p81
      $region18: #{sharp_sep_conv.4} parent=11 // pred_check_branch
        %195 = sbr.rel (%p193) target = $region20
      $region19: #{sharp_sep_conv.4} parent=11 // pred_region
        _
      $region20: #{sharp_sep_conv.4} parent=11 // pred_fallthru
        _
      // Predicated region
      $region21: #{sharp_sep_conv.4} parent=11 // pred_check
        %p196 = pneg %p102
      $region22: #{sharp_sep_conv.4} parent=11 // pred_check_branch
        %198 = sbr.rel (%p196) target = $region24
      $region23: #{sharp_sep_conv.4} parent=11 // pred_region
        _
      $region24: #{sharp_sep_conv.4} parent=11 // pred_fallthru
        _
      // Predicated region
      $region25: #{sharp_sep_conv.4} parent=11 // pred_check
        %p199 = pneg %p123
      $region26: #{sharp_sep_conv.4} parent=11 // pred_check_branch
        %201 = sbr.rel (%p199) target = $region28
      $region27: #{sharp_sep_conv.4} parent=11 // pred_region
        _
      $region28: #{sharp_sep_conv.4} parent=11 // pred_fallthru
        _
    $region12: #{sharp_sep_conv.4} parent=5 // pred_fallthru
      _
    %p202 = scmp.lt.s32.totalorder %s13, 2
    // Predicated region
    $region29: #{sharp_sep_conv.4} parent=5 // pred_check
      %p203 = pneg %p202
    $region30: #{sharp_sep_conv.4} parent=5 // pred_check_branch
      %205 = sbr.rel (%p203) target = $region32
    $region31: #{sharp_sep_conv.4} parent=5 // pred_region
      // Predicated region
      $region33: #{sharp_sep_conv.4} parent=31 // pred_check
        %p206 = pneg %p33
      $region34: #{sharp_sep_conv.4} parent=31 // pred_check_branch
        %208 = sbr.rel (%p206) target = $region36
      $region35: #{sharp_sep_conv.4} parent=31 // pred_region
        %p209 = scmp.lt.s32.totalorder %s13, 1
        %s210 = scalar_select %p209, %s13, 1
        %s211 = smul.addr %s210, 2
        %s212 = smul.addr %s211, 4
        %s213 = scalar_lea.vmem %s0, %s212
      $region36: #{sharp_sep_conv.4} parent=31 // pred_fallthru
        _
    $region32: #{sharp_sep_conv.4} parent=5 // pred_fallthru
      _
    %p214 = scmp.le.s32.totalorder 1, %s13
    %p215 = scmp.lt.s32.totalorder %s13, 3
    %p216 = pnand %p214, %p215
    %p217 = pneg %p216
    // Predicated region
    $region37: #{sharp_sep_conv.4} parent=5 // pred_check
      _
    $region38: #{sharp_sep_conv.4} parent=5 // pred_check_branch
      %219 = sbr.rel (%p216) target = $region40
    $region39: #{sharp_sep_conv.4} parent=5 // pred_region
      %s220 = ssub.s32 %s13, 1
      %p221 = scmp.lt.s32.totalorder %s18, 1
      %s222 = scalar_select %p221, %s18, 1
      %s223 = smul.addr %s222, 2
      %s224 = smul.addr %s223, 4
      %s225 = scalar_lea.vmem %s0, %s224
      %p226 = pneg %p39
      %p227 = pneg %p36
      %p228 = pneg %p60
      %p229 = pneg %p57
      %p230 = pneg %p81
      %p231 = pneg %p78
      %p232 = pneg %p102
      %p233 = pneg %p99
      %p234 = pneg %p123
      %p235 = pneg %p120
      %p236 = pneg %p149
      %p237 = pneg %p146
      %p238 = scmp.lt.s32.totalorder %s18, 1
      %s239 = scalar_select %p238, %s18, 1
      %s240 = smul.addr %s239, 2
      %s241 = smul.addr %s240, 4
      %s242 = scalar_lea.vmem %s5, %s241
      %p243 = pneg %p175
      %p244 = pneg %p172
      %p245 = scmp.lt.s32.totalorder %s18, 1
      %s246 = scalar_select %p245, %s18, 1
      %s247 = smul.addr %s246, 8
      %s248 = scalar_lea.vmem %s6, %s247
      %p249 = scmp.lt.s32.totalorder %s18, 1
      %s250 = scalar_select %p249, %s18, 1
      %s251 = smul.addr %s250, 2
      %s252 = smul.addr %s251, 4
      %s253 = scalar_lea.vmem %s0, %s252
      %p254 = scmp.lt.s32.totalorder %s18, 1
      %s255 = scalar_select %p254, %s18, 1
      %s256 = smul.addr %s255, 2
      %s257 = smul.addr %s256, 4
      %s258 = scalar_lea.vmem %s5, %s257
      %p259 = scmp.lt.s32.totalorder %s18, 1
      %s260 = scalar_select %p259, %s18, 1
      %s261 = smul.addr %s260, 8
      %s262 = scalar_lea.vmem %s6, %s261
      %v264 = vld [vmem:[%s253] sm:$0xff]
      %v265 = vunpack.c.l.bf16 %v264
      %v266 = vunpack.c.h.bf16 %v264
      %v267 = vld [vmem:[%s1] sm:$0xff]
      %269 = vset.pattern.permute.xlu0 0
      %270 = vperm.xlu0 %269, %v267
      %v271 = vpop.permute.xlu0 %270
      %v273 = vmul.f32 %v265, %v271
      %v274 = vmul.f32 %v266, %v271
      %v275 = vld [vmem:[%s2] sm:$0xff]
      %277 = vset.pattern.permute.xlu0 0
      %278 = vperm.xlu0 %277, %v275
      %v279 = vpop.permute.xlu0 %278
      %v281 = vadd.f32 %v273, %v279
      %v282 = vadd.f32 %v274, %v279
      %v283 = vmax.f32 %v281, 0.0
      %v284 = vmax.f32 %v282, 0.0
      %v285 = vlaneseq
      %v286 = vand.u32 %v285, 127
      %v287 = vadd.s32 %v286, 128
      %vm288 = vcmp.lt.s32.totalorder %v286, 0
      %v289 = vsub.s32 0, %v286
      %v290 = vsel %vm288, %v289, %v286
      %v291 = vshrl.u32 %v290, 4
      %v292 = vand.u32 %v290, 15
      %v293 = vsub.s32 0, %v292
      %v294 = vsel %vm288, %v293, %v292
      %vm295 = vcmp.lt.s32.totalorder %v287, 0
      %v296 = vsub.s32 0, %v287
      %v297 = vsel %vm295, %v296, %v287
      %v298 = vshrl.u32 %v297, 4
      %v299 = vand.u32 %v297, 15
      %v300 = vsub.s32 0, %v299
      %v301 = vsel %vm295, %v300, %v299
      %vm302 = vcmp.ne.s32.totalorder %v294, 0
      %vm303 = vcmp.ne.s32.totalorder %v301, 0
      %vm304 = vcmp.lt.s32.totalorder %v294, 0
      %vm305 = vcmp.lt.s32.totalorder %v301, 0
      %vm306 = vmand %vm304, %vm302
      %vm307 = vmand %vm305, %vm303
      %v308 = vadd.s32 %v294, 16
      %v309 = vadd.s32 %v301, 16
      %v310 = vsel %vm306, %v308, %v294
      %v311 = vsel %vm307, %v309, %v301
      %vm312 = vcmp.ge.s32.totalorder %v286, 16
      %vm313 = vcmp.ge.s32.totalorder %v287, 16
      %vm314 = vcmp.lt.s32.totalorder %v286, 256
      %vm315 = vcmp.lt.s32.totalorder %v287, 256
      %vm316 = vmand %vm312, %vm314
      %vm317 = vmand %vm313, %vm315
      %v318 = vsel %vm316, 1, 0
      %v319 = vsel %vm317, 1, 0
      %v320 = vcvt.s32.f32 %v318
      %v321 = vcvt.s32.f32 %v319
      %vm322 = vcmp.ge.s32.totalorder %v310, 1
      %vm323 = vcmp.ge.s32.totalorder %v311, 1
      %vm324 = vcmp.lt.s32.totalorder %v310, 16
      %vm325 = vcmp.lt.s32.totalorder %v311, 16
      %vm326 = vmand %vm322, %vm324
      %vm327 = vmand %vm323, %vm325
      %v328 = vsel %vm326, 1, 0
      %v329 = vsel %vm327, 1, 0
      %v330 = vcvt.s32.f32 %v328
      %v331 = vcvt.s32.f32 %v329
      %vm332 = vcmp.ge.s32.totalorder %v286, 0
      %vm333 = vcmp.ge.s32.totalorder %v287, 0
      %vm334 = vcmp.lt.s32.totalorder %v286, 240
      %vm335 = vcmp.lt.s32.totalorder %v287, 240
      %vm336 = vmand %vm332, %vm334
      %vm337 = vmand %vm333, %vm335
      %v338 = vsel %vm336, 1, 0
      %v339 = vsel %vm337, 1, 0
      %v340 = vcvt.s32.f32 %v338
      %v341 = vcvt.s32.f32 %v339
      %vm342 = vcmp.ge.s32.totalorder %v310, 0
      %vm343 = vcmp.ge.s32.totalorder %v311, 0
      %vm344 = vcmp.lt.s32.totalorder %v310, 15
      %vm345 = vcmp.lt.s32.totalorder %v311, 15
      %vm346 = vmand %vm342, %vm344
      %vm347 = vmand %vm343, %vm345
      %v348 = vsel %vm346, 1, 0
      %v349 = vsel %vm347, 1, 0
      %v350 = vcvt.s32.f32 %v348
      %v351 = vcvt.s32.f32 %v349
      %352 = vrot.lane.b32.xlu0 %v283, 17
      %v353 = vpop.permute.xlu0 %352
      %354 = vrot.lane.b32.xlu0 %v284, 17
      %v355 = vpop.permute.xlu0 %354
      %vm356 = vcmp.lt.s32.totalorder %v286, 17
      %v357 = vsel %vm356, %v353, %v355
      %v358 = vsel %vm356, %v355, %v353
      %v359 = vmul.f32 %v320, %v330
      %v360 = vmul.f32 %v321, %v331
      %v361 = vmul.f32 %v358, %v359
      %v362 = vmul.f32 %v357, %v360
      %v363 = vld [vmem:[%s3] sm:$0xff]
      %365 = vset.pattern.permute.xlu0 0
      %366 = vperm.xlu0 %365, %v363
      %v367 = vpop.permute.xlu0 %366
      %v369 = vmul.f32 %v367, %v361
      %v370 = vmul.f32 %v367, %v362
      %v371 = vadd.f32 %v369, 0.0
      %v372 = vadd.f32 %v370, 0.0
      %373 = vrot.lane.b32.xlu0 %v283, 16
      %v374 = vpop.permute.xlu0 %373
      %375 = vrot.lane.b32.xlu0 %v284, 16
      %v376 = vpop.permute.xlu0 %375
      %vm377 = vcmp.lt.s32.totalorder %v286, 16
      %v378 = vsel %vm377, %v374, %v376
      %v379 = vsel %vm377, %v376, %v374
      %v380 = vmul.f32 %v379, %v320
      %v381 = vmul.f32 %v378, %v321
      %s382 = scalar_lea.vmem %s3, 8
      %v383 = vld [vmem:[%s382] sm:$0xff]
      %385 = vset.pattern.permute.xlu0 0
      %386 = vperm.xlu0 %385, %v383
      %v387 = vpop.permute.xlu0 %386
      %v389 = vmul.f32 %v387, %v380
      %v390 = vmul.f32 %v387, %v381
      %v391 = vadd.f32 %v371, %v389
      %v392 = vadd.f32 %v372, %v390
      %393 = vrot.lane.b32.xlu0 %v283, 15
      %v394 = vpop.permute.xlu0 %393
      %395 = vrot.lane.b32.xlu0 %v284, 15
      %v396 = vpop.permute.xlu0 %395
      %vm397 = vcmp.lt.s32.totalorder %v286, 15
      %v398 = vsel %vm397, %v394, %v396
      %v399 = vsel %vm397, %v396, %v394
      %v400 = vmul.f32 %v320, %v350
      %v401 = vmul.f32 %v321, %v351
      %v402 = vmul.f32 %v399, %v400
      %v403 = vmul.f32 %v398, %v401
      %s404 = scalar_lea.vmem %s3, 16
      %v405 = vld [vmem:[%s404] sm:$0xff]
      %407 = vset.pattern.permute.xlu0 0
      %408 = vperm.xlu0 %407, %v405
      %v409 = vpop.permute.xlu0 %408
      %v411 = vmul.f32 %v409, %v402
      %v412 = vmul.f32 %v409, %v403
      %v413 = vadd.f32 %v391, %v411
      %v414 = vadd.f32 %v392, %v412
      %415 = vrot.lane.b32.xlu0 %v283, 1
      %v416 = vpop.permute.xlu0 %415
      %417 = vrot.lane.b32.xlu0 %v284, 1
      %v418 = vpop.permute.xlu0 %417
      %vm419 = vcmp.lt.s32.totalorder %v286, 1
      %v420 = vsel %vm419, %v416, %v418
      %v421 = vsel %vm419, %v418, %v416
      %v422 = vmul.f32 %v421, %v330
      %v423 = vmul.f32 %v420, %v331
      %s424 = scalar_lea.vmem %s3, 24
      %v425 = vld [vmem:[%s424] sm:$0xff]
      %427 = vset.pattern.permute.xlu0 0
      %428 = vperm.xlu0 %427, %v425
      %v429 = vpop.permute.xlu0 %428
      %v431 = vmul.f32 %v429, %v422
      %v432 = vmul.f32 %v429, %v423
      %v433 = vadd.f32 %v413, %v431
      %v434 = vadd.f32 %v414, %v432
      %s435 = scalar_lea.vmem %s3, 32
      %v436 = vld [vmem:[%s435] sm:$0xff]
      %438 = vset.pattern.permute.xlu0 0
      %439 = vperm.xlu0 %438, %v436
      %v440 = vpop.permute.xlu0 %439
      %v442 = vmul.f32 %v440, %v283
      %v443 = vmul.f32 %v440, %v284
      %v444 = vadd.f32 %v433, %v442
      %v445 = vadd.f32 %v434, %v443
      %446 = vrot.lane.b32.xlu0 %v283, 127
      %v447 = vpop.permute.xlu0 %446
      %448 = vrot.lane.b32.xlu0 %v284, 127
      %v449 = vpop.permute.xlu0 %448
      %vm450 = vcmp.lt.s32.totalorder %v286, 127
      %v451 = vsel %vm450, %v447, %v449
      %v452 = vsel %vm450, %v449, %v447
      %v453 = vmul.f32 %v451, %v350
      %v454 = vmul.f32 %v452, %v351
      %s455 = scalar_lea.vmem %s3, 40
      %v456 = vld [vmem:[%s455] sm:$0xff]
      %458 = vset.pattern.permute.xlu0 0
      %459 = vperm.xlu0 %458, %v456
      %v460 = vpop.permute.xlu0 %459
      %v462 = vmul.f32 %v460, %v453
      %v463 = vmul.f32 %v460, %v454
      %v464 = vadd.f32 %v444, %v462
      %v465 = vadd.f32 %v445, %v463
      %466 = vrot.lane.b32.xlu0 %v283, 113
      %v467 = vpop.permute.xlu0 %466
      %468 = vrot.lane.b32.xlu0 %v284, 113
      %v469 = vpop.permute.xlu0 %468
      %vm470 = vcmp.lt.s32.totalorder %v286, 113
      %v471 = vsel %vm470, %v467, %v469
      %v472 = vsel %vm470, %v469, %v467
      %v473 = vmul.f32 %v340, %v330
      %v474 = vmul.f32 %v341, %v331
      %v475 = vmul.f32 %v471, %v473
      %v476 = vmul.f32 %v472, %v474
      %s477 = scalar_lea.vmem %s3, 48
      %v478 = vld [vmem:[%s477] sm:$0xff]
      %480 = vset.pattern.permute.xlu0 0
      %481 = vperm.xlu0 %480, %v478
      %v482 = vpop.permute.xlu0 %481
      %v484 = vmul.f32 %v482, %v475
      %v485 = vmul.f32 %v482, %v476
      %v486 = vadd.f32 %v464, %v484
      %v487 = vadd.f32 %v465, %v485
      %488 = vrot.lane.b32.xlu0 %v283, 112
      %v489 = vpop.permute.xlu0 %488
      %490 = vrot.lane.b32.xlu0 %v284, 112
      %v491 = vpop.permute.xlu0 %490
      %vm492 = vcmp.lt.s32.totalorder %v286, 112
      %v493 = vsel %vm492, %v489, %v491
      %v494 = vsel %vm492, %v491, %v489
      %v495 = vmul.f32 %v493, %v340
      %v496 = vmul.f32 %v494, %v341
      %s497 = scalar_lea.vmem %s3, 56
      %v498 = vld [vmem:[%s497] sm:$0xff]
      %500 = vset.pattern.permute.xlu0 0
      %501 = vperm.xlu0 %500, %v498
      %v502 = vpop.permute.xlu0 %501
      %v504 = vmul.f32 %v502, %v495
      %v505 = vmul.f32 %v502, %v496
      %v506 = vadd.f32 %v486, %v504
      %v507 = vadd.f32 %v487, %v505
      %508 = vrot.lane.b32.xlu0 %v283, 111
      %v509 = vpop.permute.xlu0 %508
      %510 = vrot.lane.b32.xlu0 %v284, 111
      %v511 = vpop.permute.xlu0 %510
      %vm512 = vcmp.lt.s32.totalorder %v286, 111
      %v513 = vsel %vm512, %v509, %v511
      %v514 = vsel %vm512, %v511, %v509
      %v515 = vmul.f32 %v340, %v350
      %v516 = vmul.f32 %v341, %v351
      %v517 = vmul.f32 %v513, %v515
      %v518 = vmul.f32 %v514, %v516
      %s519 = scalar_lea.vmem %s3, 64
      %v520 = vld [vmem:[%s519] sm:$0xff]
      %522 = vset.pattern.permute.xlu0 0
      %523 = vperm.xlu0 %522, %v520
      %v524 = vpop.permute.xlu0 %523
      %v526 = vmul.f32 %v524, %v517
      %v527 = vmul.f32 %v524, %v518
      %v528 = vadd.f32 %v506, %v526
      %v529 = vadd.f32 %v507, %v527
      %v530 = vld [vmem:[%s4] sm:$0xf]
      %v531 = vpack.c.bf16 %v528, %v528
      %v532 = vpack.c.bf16 %v529, %v529
      %vm533 = vcmask 64512
      %v535 = vsel %vm533, %v530, 0
      %vm537 = vcmask 1043456
      %v539 = vsel %vm537, %v531, 0
      %v542 = vsel %vm537, %v532, 0
      %544 = vmatpush.bf16.msra.mxu0 0
      %545 = vmatpush.bf16.msra.mxu0 0
      %546 = vmatpush.bf16.msra.mxu0 0
      %547 = vmatpush.bf16.msra.mxu0 0
      %548 = vmatpush.bf16.msra.mxu0 0
      %549 = vmatpush.bf16.msra.mxu0 0
      %550 = vmatpush.bf16.msra.mxu0 0
      %551 = vmatpush.bf16.msra.mxu0 %v539
      %552 = vmatmul.bf16.gmra.mxu0 %v535
      %v553 = vpop.f32.mrf.mxu0
      %v554 = vadd.f32 0.0, %v553
      %v555 = vpop.f32.mrf.mxu0
      %556 = vdwg.mxu0
      %557 = vmatpush.bf16.msra.mxu0 0
      %558 = vmatpush.bf16.msra.mxu0 0
      %559 = vmatpush.bf16.msra.mxu0 0
      %560 = vmatpush.bf16.msra.mxu0 0
      %561 = vmatpush.bf16.msra.mxu0 0
      %562 = vmatpush.bf16.msra.mxu0 0
      %563 = vmatpush.bf16.msra.mxu0 0
      %564 = vmatpush.bf16.msra.mxu0 %v542
      %565 = vmatmul.bf16.gmra.mxu0 %v535
      %v566 = vpop.f32.mrf.mxu0
      %v567 = vadd.f32 0.0, %v566
      %v568 = vpop.f32.mrf.mxu0
      %569 = vdwg.mxu0
      %v570 = vadd.f32 %v554, %v567
      %571 = vadd.xlane.f32.xlu0 %v570
      %v572 = vpop.xlane.xlu0 %571
      %v573 = vmul.f32 %v554, %v554
      %v574 = vmul.f32 %v567, %v567
      %v575 = vadd.f32 %v573, %v574
      %576 = vadd.xlane.f32.xlu0 %v575
      %v577 = vpop.xlane.xlu0 %576
      %vm578 = vcmask 7168
      %v579 = vsel %vm578, %v572, %v577
      %vm580 = vcmask 15360
      %581 = vst.msk [vmem:[%s262] sm:$0xff] %vm580, %v579
      %v582 = vpack.c.bf16 %v567, %v554
      %583 = vst [vmem:[%s258] sm:$0xff] %v582
      %p584 = scmp.lt.s32.totalorder %s18, 1
      %s585 = scalar_select %p584, %s18, 1
      %s586 = smul.addr %s585, 2
      %s587 = smul.addr %s586, 4
      %s588 = scalar_lea.vmem %s5, %s587
      %p589 = scmp.lt.s32.totalorder %s18, 1
      %s590 = scalar_select %p589, %s18, 1
      %s591 = smul.addr %s590, 8
      %s592 = scalar_lea.vmem %s6, %s591
      // Predicated region
      $region41: #{sharp_sep_conv.4} parent=39 // pred_check
        %p593 = pneg %p146
      $region42: #{sharp_sep_conv.4} parent=39 // pred_check_branch
        %595 = sbr.rel (%p593) target = $region44
      $region43: #{sharp_sep_conv.4} parent=39 // pred_region
        _
      $region44: #{sharp_sep_conv.4} parent=39 // pred_fallthru
        _
      // Predicated region
      $region45: #{sharp_sep_conv.4} parent=39 // pred_check
        %p596 = pneg %p172
      $region46: #{sharp_sep_conv.4} parent=39 // pred_check_branch
        %598 = sbr.rel (%p596) target = $region48
      $region47: #{sharp_sep_conv.4} parent=39 // pred_region
        _
      $region48: #{sharp_sep_conv.4} parent=39 // pred_fallthru
        _
    $region40: #{sharp_sep_conv.4} parent=5 // pred_fallthru
      _
    %p599 = scmp.le.s32.totalorder 2, %s13
    // Predicated region
    $region49: #{sharp_sep_conv.4} parent=5 // pred_check
      %p600 = pneg %p599
    $region50: #{sharp_sep_conv.4} parent=5 // pred_check_branch
      %602 = sbr.rel (%p600) target = $region52
    $region51: #{sharp_sep_conv.4} parent=5 // pred_region
      %s603 = ssub.s32 %s13, 2
      // Predicated region
      $region53: #{sharp_sep_conv.4} parent=51 // pred_check
        %p604 = pneg %p152
      $region54: #{sharp_sep_conv.4} parent=51 // pred_check_branch
        %606 = sbr.rel (%p604) target = $region56
      $region55: #{sharp_sep_conv.4} parent=51 // pred_region
        %p607 = scmp.lt.s32.totalorder %s19, 1
        %s608 = scalar_select %p607, %s19, 1
        %s609 = smul.addr %s608, 2
        %s610 = smul.addr %s609, 4
        %s611 = scalar_lea.vmem %s5, %s610
      $region56: #{sharp_sep_conv.4} parent=51 // pred_fallthru
        _
      // Predicated region
      $region57: #{sharp_sep_conv.4} parent=51 // pred_check
        %p612 = pneg %p178
      $region58: #{sharp_sep_conv.4} parent=51 // pred_check_branch
        %614 = sbr.rel (%p612) target = $region60
      $region59: #{sharp_sep_conv.4} parent=51 // pred_region
        %p615 = scmp.lt.s32.totalorder %s19, 1
        %s616 = scalar_select %p615, %s19, 1
        %s617 = smul.addr %s616, 8
        %s618 = scalar_lea.vmem %s6, %s617
      $region60: #{sharp_sep_conv.4} parent=51 // pred_fallthru
        _
    $region52: #{sharp_sep_conv.4} parent=5 // pred_fallthru
      _
  $region6: #{sharp_sep_conv.4} parent=0 // loop_footer
    %s17 = sadd.s32 1, %s13
  $region7: #{sharp_sep_conv.4} parent=0 // loop_footer_branch
    %12 = sbr.rel target = $region3
  $region8: #{sharp_sep_conv.4} parent=0 // loop_exit
    _

</llo_original>
